<compile_context>
chip_gen: v7x
topology: tpu7x:2x2x1
jax: 0.10.0
libtpu: 0.0.40
codegen_flags: <defaults>
</compile_context>

<pallas_src>
import functools

import jax
import jax.numpy as jnp
import numpy as np
from jax.experimental import pallas as pl
from jax.experimental.pallas import tpu as pltpu


def _corr1d_kernel(x_ref, y_ref, o_ref, *, max_disp, width, padded_inputs):
    """x_ref, y_ref: (C, TH, W) blocks (or (C, TH, W+D) if wrapper-padded).
       o_ref       : (TH, W) block of the (N, H, W) output."""
    D = max_disp
    W = width

    # TODO(synk): for bf16 inputs on v6e/v7x the multiplies could stay in bf16
    # (f32 accumulate only); kept as a blanket f32 upcast so the same kernel
    # is also correct/fast on v5e (no bf16 VALU).
    if padded_inputs:
        xp = x_ref[...].astype(jnp.float32)       # (C, TH, W+D), x padded right
        yp = y_ref[...].astype(jnp.float32)       # (C, TH, W+D), y padded left
        x = xp[..., :W]
        y = yp[..., D:D + W]
    else:
        x = x_ref[...].astype(jnp.float32)        # (C, TH, W)
        y = y_ref[...].astype(jnp.float32)
        if D > 0:
            # Zero-extend in registers only (no HBM traffic) so every shifted
            # term below is a static lane slice.
            z = jnp.zeros(x.shape[:-1] + (D,), jnp.float32)
            xp = jnp.concatenate([x, z], axis=-1)   # x[w+d] slices, zero tail
            yp = jnp.concatenate([z, y], axis=-1)   # y[w-d] slices, zero head
        else:
            xp, yp = x, y

    C = x.shape[0]

    # Sliding-window sums: D adds each (unrolled, static slices).
    xsum = x                                      # d = 0 term of Xsum
    ysum = jnp.zeros_like(y)
    for d in range(1, D + 1):
        xsum = xsum + xp[..., d:d + W]            # x[w+d], zero where w+d >= W
        ysum = ysum + yp[..., D - d:D - d + W]    # y[w-d], zero where w-d <  0

    # Two multiplies + one add per element, then a leading-axis channel sum.
    prod = x * ysum + y * xsum                    # (C, TH, W)
    scale = 1.0 / (C * (2 * D + 1))
    o_ref[...] = (jnp.sum(prod, axis=0) * scale).astype(o_ref.dtype)


def _pick_tile_h(N, C, H, w_block, itemsize, budget_bytes):
    """Largest H-tile that (a) divides H, (b) keeps the block legal for TPU
    tiling (TH % 8 == 0 or TH == H), and (c) keeps double-buffered input
    blocks plus live f32 temporaries under a soft VMEM budget.  If N == 1,
    prefer >= 2 grid steps so both TensorCores of a v7x chip get work."""
    def cost(th):
        blk_in = C * th * w_block * itemsize      # one input block
        blk_f32 = C * th * w_block * 4            # one live f32 temporary
        return 4 * blk_in + 8 * blk_f32           # 2 inputs x 2 buffers + temps

    candidates = [th for th in range(1, H + 1)
                  if H % th == 0 and (th % 8 == 0 or th == H)]
    fitting = [th for th in candidates if cost(th) <= budget_bytes]
    if not fitting:
        fitting = [min(candidates)]
    if N == 1:
        two_step = [th for th in fitting if H // th >= 2]
        if two_step:
            return max(two_step)
    return max(fitting)


def corr1d(x, y, max_disp=10, *, pad_in_kernel=True,
           vmem_budget_bytes=12 * 1024 * 1024):
    """x, y: (N, C, H, W) as in the PyTorch module.  Returns the mean 1-D
    correlation volume of shape (N, H, W), then .squeeze() (like torch)."""
    assert x.shape == y.shape and x.ndim == 4
    N, C, H, W = x.shape
    D = max_disp

    if pad_in_kernel:
        x_in, y_in = x, y
        Wb = W
    else:
        # Fallback path: materialize the zero padding in HBM (one extra copy
        # of the inputs), identical math inside the kernel.
        x_in = jnp.pad(x, ((0, 0), (0, 0), (0, 0), (0, D)))
        y_in = jnp.pad(y, ((0, 0), (0, 0), (0, 0), (D, 0)))
        Wb = W + D

    TH = _pick_tile_h(N, C, H, W + D, x.dtype.itemsize, vmem_budget_bytes)
    grid = (N, H // TH)

    kernel = functools.partial(_corr1d_kernel, max_disp=D, width=W,
                               padded_inputs=not pad_in_kernel)

    out = pl.pallas_call(
        kernel,
        out_shape=jax.ShapeDtypeStruct((N, H, W), x.dtype),
        grid_spec=pltpu.PrefetchScalarGridSpec(
            num_scalar_prefetch=0,
            grid=grid,
            in_specs=[
                pl.BlockSpec((None, C, TH, Wb), lambda n, h: (n, 0, h, 0)),
                pl.BlockSpec((None, C, TH, Wb), lambda n, h: (n, 0, h, 0)),
            ],
            out_specs=pl.BlockSpec((None, TH, W), lambda n, h: (n, h, 0)),
        ),
        compiler_params=pltpu.CompilerParams(
            dimension_semantics=("parallel", "parallel"),
            vmem_limit_bytes=32 * 1024 * 1024,
        ),
    )(x_in, y_in)

    # Note: the last stored dim is W (problem-defined); if W is not a multiple
    # of 128 the final store is a masked partial store, which is unavoidable
    # without a sublane->lane repack of the output.
    return jnp.squeeze(out)   # matches torch .squeeze() (drops ALL size-1 dims)


def corr1d_ref(x, y, max_disp):
    """Plain-JAX mirror of the PyTorch forward, for verification."""
    N, C, H, W = x.shape
    corrs = []
    for i in range(-max_disp, 0):
        s1 = y[..., :W + i]
        shifted = jnp.pad(s1, ((0, 0), (0, 0), (0, 0), (-i, 0)))
        corrs.append(jnp.mean(shifted * x, axis=1))
    for i in range(max_disp + 1):
        s2 = x[..., i:]
        shifted = jnp.pad(s2, ((0, 0), (0, 0), (0, 0), (0, i)))
        corrs.append(jnp.mean(shifted * y, axis=1))
    temp = jnp.stack(corrs)                    # (2D+1, N, H, W)
    out = jnp.transpose(temp, (1, 0, 2, 3))    # (N, 2D+1, H, W)
    return jnp.squeeze(jnp.mean(out, axis=1))


if __name__ == "__main__":
    key = jax.random.PRNGKey(0)
    kx, ky = jax.random.split(key)

    N, C, H, W = 2, 4, 16, 32
    max_disp = 10  # module default

    x = jax.random.normal(kx, (N, C, H, W), dtype=jnp.float32)
    y = jax.random.normal(ky, (N, C, H, W), dtype=jnp.float32)

    ref = corr1d_ref(x, y, max_disp)

    def _run_and_check(**kw):
        out = jax.block_until_ready(corr1d(x, y, max_disp=max_disp, **kw))
        assert out.shape == ref.shape, (out.shape, ref.shape)
        np.testing.assert_allclose(np.asarray(out), np.asarray(ref),
                                   rtol=1e-5, atol=1e-5)
        return out

    try:
        # Preferred path: zero padding built in-register inside the kernel
        # (no wrapper pad/transpose HBM copies).
        out = _run_and_check()
    except Exception:
        # Known-good fallback: pad the width axis in the wrapper (one extra
        # HBM copy) if this Mosaic build cannot lower the in-register lane
        # concatenate used for boundary handling.
        out = _run_and_check(pad_in_kernel=False)

    print("KERNEL_OK")
</pallas_src>

<mosaic_0001>
module attributes {stable_mosaic.version = 11 : i64} {
  func.func @_corr1d_kernel(%arg0: i32, %arg1: i32, %arg2: memref<1x4x16x32xf32, #tpu.memory_space<vmem>>, %arg3: memref<1x4x16x32xf32, #tpu.memory_space<vmem>>, %arg4: memref<1x16x32xf32, #tpu.memory_space<vmem>>) attributes {dimension_semantics = [#tpu.dimension_semantics<parallel>, #tpu.dimension_semantics<parallel>], iteration_bounds = array<i64: 2, 1>, scalar_prefetch = 0 : i64, scratch_operands = 0 : i64, tpu.core_type = #tpu.core_type<tc>, window_params = [{transform_indices = @transform_0, window_bounds = array<i64: 1, 4, 16, 32>}, {transform_indices = @transform_1, window_bounds = array<i64: 1, 4, 16, 32>}, {transform_indices = @transform_2, window_bounds = array<i64: 1, 16, 32>}]} {
    %c0 = arith.constant 0 : index
    %c0_0 = arith.constant 0 : index
    %c0_1 = arith.constant 0 : index
    %c0_2 = arith.constant 0 : index
    %0 = vector.load %arg2[%c0, %c0_0, %c0_1, %c0_2] : memref<1x4x16x32xf32, #tpu.memory_space<vmem>>, vector<1x4x16x32xf32>
    %1 = vector.shape_cast %0 : vector<1x4x16x32xf32> to vector<4x16x32xf32>
    %c0_3 = arith.constant 0 : index
    %c0_4 = arith.constant 0 : index
    %c0_5 = arith.constant 0 : index
    %c0_6 = arith.constant 0 : index
    %2 = vector.load %arg3[%c0_3, %c0_4, %c0_5, %c0_6] : memref<1x4x16x32xf32, #tpu.memory_space<vmem>>, vector<1x4x16x32xf32>
    %3 = vector.shape_cast %2 : vector<1x4x16x32xf32> to vector<4x16x32xf32>
    %cst = arith.constant 0.000000e+00 : f32
    %4 = vector.broadcast %cst : f32 to vector<4x16x10xf32>
    %5 = tpu.concatenate %1, %4 in 2 : vector<4x16x32xf32>, vector<4x16x10xf32> -> vector<4x16x42xf32>
    %6 = tpu.concatenate %4, %3 in 2 : vector<4x16x10xf32>, vector<4x16x32xf32> -> vector<4x16x42xf32>
    %cst_7 = arith.constant 0.000000e+00 : f32
    %7 = vector.broadcast %cst_7 : f32 to vector<4x16x32xf32>
    %8 = vector.extract_strided_slice %5 {offsets = [0, 0, 1], sizes = [4, 16, 32], strides = [1, 1, 1]} : vector<4x16x42xf32> to vector<4x16x32xf32>
    %9 = arith.addf %1, %8 : vector<4x16x32xf32>
    %10 = vector.extract_strided_slice %6 {offsets = [0, 0, 9], sizes = [4, 16, 32], strides = [1, 1, 1]} : vector<4x16x42xf32> to vector<4x16x32xf32>
    %11 = arith.addf %7, %10 : vector<4x16x32xf32>
    %12 = vector.extract_strided_slice %5 {offsets = [0, 0, 2], sizes = [4, 16, 32], strides = [1, 1, 1]} : vector<4x16x42xf32> to vector<4x16x32xf32>
    %13 = arith.addf %9, %12 : vector<4x16x32xf32>
    %14 = vector.extract_strided_slice %6 {offsets = [0, 0, 8], sizes = [4, 16, 32], strides = [1, 1, 1]} : vector<4x16x42xf32> to vector<4x16x32xf32>
    %15 = arith.addf %11, %14 : vector<4x16x32xf32>
    %16 = vector.extract_strided_slice %5 {offsets = [0, 0, 3], sizes = [4, 16, 32], strides = [1, 1, 1]} : vector<4x16x42xf32> to vector<4x16x32xf32>
    %17 = arith.addf %13, %16 : vector<4x16x32xf32>
    %18 = vector.extract_strided_slice %6 {offsets = [0, 0, 7], sizes = [4, 16, 32], strides = [1, 1, 1]} : vector<4x16x42xf32> to vector<4x16x32xf32>
    %19 = arith.addf %15, %18 : vector<4x16x32xf32>
    %20 = vector.extract_strided_slice %5 {offsets = [0, 0, 4], sizes = [4, 16, 32], strides = [1, 1, 1]} : vector<4x16x42xf32> to vector<4x16x32xf32>
    %21 = arith.addf %17, %20 : vector<4x16x32xf32>
    %22 = vector.extract_strided_slice %6 {offsets = [0, 0, 6], sizes = [4, 16, 32], strides = [1, 1, 1]} : vector<4x16x42xf32> to vector<4x16x32xf32>
    %23 = arith.addf %19, %22 : vector<4x16x32xf32>
    %24 = vector.extract_strided_slice %5 {offsets = [0, 0, 5], sizes = [4, 16, 32], strides = [1, 1, 1]} : vector<4x16x42xf32> to vector<4x16x32xf32>
    %25 = arith.addf %21, %24 : vector<4x16x32xf32>
    %26 = vector.extract_strided_slice %6 {offsets = [0, 0, 5], sizes = [4, 16, 32], strides = [1, 1, 1]} : vector<4x16x42xf32> to vector<4x16x32xf32>
    %27 = arith.addf %23, %26 : vector<4x16x32xf32>
    %28 = vector.extract_strided_slice %5 {offsets = [0, 0, 6], sizes = [4, 16, 32], strides = [1, 1, 1]} : vector<4x16x42xf32> to vector<4x16x32xf32>
    %29 = arith.addf %25, %28 : vector<4x16x32xf32>
    %30 = vector.extract_strided_slice %6 {offsets = [0, 0, 4], sizes = [4, 16, 32], strides = [1, 1, 1]} : vector<4x16x42xf32> to vector<4x16x32xf32>
    %31 = arith.addf %27, %30 : vector<4x16x32xf32>
    %32 = vector.extract_strided_slice %5 {offsets = [0, 0, 7], sizes = [4, 16, 32], strides = [1, 1, 1]} : vector<4x16x42xf32> to vector<4x16x32xf32>
    %33 = arith.addf %29, %32 : vector<4x16x32xf32>
    %34 = vector.extract_strided_slice %6 {offsets = [0, 0, 3], sizes = [4, 16, 32], strides = [1, 1, 1]} : vector<4x16x42xf32> to vector<4x16x32xf32>
    %35 = arith.addf %31, %34 : vector<4x16x32xf32>
    %36 = vector.extract_strided_slice %5 {offsets = [0, 0, 8], sizes = [4, 16, 32], strides = [1, 1, 1]} : vector<4x16x42xf32> to vector<4x16x32xf32>
    %37 = arith.addf %33, %36 : vector<4x16x32xf32>
    %38 = vector.extract_strided_slice %6 {offsets = [0, 0, 2], sizes = [4, 16, 32], strides = [1, 1, 1]} : vector<4x16x42xf32> to vector<4x16x32xf32>
    %39 = arith.addf %35, %38 : vector<4x16x32xf32>
    %40 = vector.extract_strided_slice %5 {offsets = [0, 0, 9], sizes = [4, 16, 32], strides = [1, 1, 1]} : vector<4x16x42xf32> to vector<4x16x32xf32>
    %41 = arith.addf %37, %40 : vector<4x16x32xf32>
    %42 = vector.extract_strided_slice %6 {offsets = [0, 0, 1], sizes = [4, 16, 32], strides = [1, 1, 1]} : vector<4x16x42xf32> to vector<4x16x32xf32>
    %43 = arith.addf %39, %42 : vector<4x16x32xf32>
    %44 = vector.extract_strided_slice %5 {offsets = [0, 0, 10], sizes = [4, 16, 32], strides = [1, 1, 1]} : vector<4x16x42xf32> to vector<4x16x32xf32>
    %45 = arith.addf %41, %44 : vector<4x16x32xf32>
    %46 = vector.extract_strided_slice %6 {offsets = [0, 0, 0], sizes = [4, 16, 32], strides = [1, 1, 1]} : vector<4x16x42xf32> to vector<4x16x32xf32>
    %47 = arith.addf %43, %46 : vector<4x16x32xf32>
    %48 = arith.mulf %1, %47 : vector<4x16x32xf32>
    %49 = arith.mulf %3, %45 : vector<4x16x32xf32>
    %50 = arith.addf %48, %49 : vector<4x16x32xf32>
    %cst_8 = arith.constant dense<0.000000e+00> : vector<16x32xf32>
    %51 = vector.multi_reduction <add>, %50, %cst_8 [0] : vector<4x16x32xf32> to vector<16x32xf32>
    %cst_9 = arith.constant 0.0119047621 : f32
    %52 = vector.broadcast %cst_9 : f32 to vector<16x32xf32>
    %53 = arith.mulf %51, %52 : vector<16x32xf32>
    %c0_10 = arith.constant 0 : index
    %c0_11 = arith.constant 0 : index
    %c0_12 = arith.constant 0 : index
    %54 = vector.load %arg4[%c0_10, %c0_11, %c0_12] : memref<1x16x32xf32, #tpu.memory_space<vmem>>, vector<1x16x32xf32>
    %55 = vector.shape_cast %54 : vector<1x16x32xf32> to vector<16x32xf32>
    %56 = vector.shape_cast %53 : vector<16x32xf32> to vector<1x16x32xf32>
    tpu.vector_store %arg4[%c0_10, %c0_11, %c0_12], %56 {strides = array<i32>} : memref<1x16x32xf32, #tpu.memory_space<vmem>>, vector<1x16x32xf32>,
    return
  }
  func.func @transform_0(%arg0: i32, %arg1: i32) -> (i32, i32, i32, i32) {
    %c0_i32 = arith.constant 0 : i32
    %c0_i32_0 = arith.constant 0 : i32
    %c0_i32_1 = arith.constant 0 : i32
    return %arg0, %c0_i32, %arg1, %c0_i32_0 : i32, i32, i32, i32
  }
  func.func @transform_1(%arg0: i32, %arg1: i32) -> (i32, i32, i32, i32) {
    %c0_i32 = arith.constant 0 : i32
    %c0_i32_0 = arith.constant 0 : i32
    %c0_i32_1 = arith.constant 0 : i32
    return %arg0, %c0_i32, %arg1, %c0_i32_0 : i32, i32, i32, i32
  }
  func.func @transform_2(%arg0: i32, %arg1: i32) -> (i32, i32, i32) {
    %c0_i32 = arith.constant 0 : i32
    %c0_i32_0 = arith.constant 0 : i32
    return %arg0, %arg1, %c0_i32 : i32, i32, i32
  }
}

module attributes {stable_mosaic.version = 11 : i64} {
  func.func @_corr1d_kernel(%arg0: i32, %arg1: i32, %arg2: memref<1x4x16x42xf32, #tpu.memory_space<vmem>>, %arg3: memref<1x4x16x42xf32, #tpu.memory_space<vmem>>, %arg4: memref<1x16x32xf32, #tpu.memory_space<vmem>>) attributes {dimension_semantics = [#tpu.dimension_semantics<parallel>, #tpu.dimension_semantics<parallel>], iteration_bounds = array<i64: 2, 1>, scalar_prefetch = 0 : i64, scratch_operands = 0 : i64, tpu.core_type = #tpu.core_type<tc>, window_params = [{transform_indices = @transform_0, window_bounds = array<i64: 1, 4, 16, 42>}, {transform_indices = @transform_1, window_bounds = array<i64: 1, 4, 16, 42>}, {transform_indices = @transform_2, window_bounds = array<i64: 1, 16, 32>}]} {
    %c0 = arith.constant 0 : index
    %c0_0 = arith.constant 0 : index
    %c0_1 = arith.constant 0 : index
    %c0_2 = arith.constant 0 : index
    %0 = vector.load %arg2[%c0, %c0_0, %c0_1, %c0_2] : memref<1x4x16x42xf32, #tpu.memory_space<vmem>>, vector<1x4x16x42xf32>
    %1 = vector.shape_cast %0 : vector<1x4x16x42xf32> to vector<4x16x42xf32>
    %c0_3 = arith.constant 0 : index
    %c0_4 = arith.constant 0 : index
    %c0_5 = arith.constant 0 : index
    %c0_6 = arith.constant 0 : index
    %2 = vector.load %arg3[%c0_3, %c0_4, %c0_5, %c0_6] : memref<1x4x16x42xf32, #tpu.memory_space<vmem>>, vector<1x4x16x42xf32>
    %3 = vector.shape_cast %2 : vector<1x4x16x42xf32> to vector<4x16x42xf32>
    %4 = vector.extract_strided_slice %1 {offsets = [0, 0, 0], sizes = [4, 16, 32], strides = [1, 1, 1]} : vector<4x16x42xf32> to vector<4x16x32xf32>
    %5 = vector.extract_strided_slice %3 {offsets = [0, 0, 10], sizes = [4, 16, 32], strides = [1, 1, 1]} : vector<4x16x42xf32> to vector<4x16x32xf32>
    %cst = arith.constant 0.000000e+00 : f32
    %6 = vector.broadcast %cst : f32 to vector<4x16x32xf32>
    %7 = vector.extract_strided_slice %1 {offsets = [0, 0, 1], sizes = [4, 16, 32], strides = [1, 1, 1]} : vector<4x16x42xf32> to vector<4x16x32xf32>
    %8 = arith.addf %4, %7 : vector<4x16x32xf32>
    %9 = vector.extract_strided_slice %3 {offsets = [0, 0, 9], sizes = [4, 16, 32], strides = [1, 1, 1]} : vector<4x16x42xf32> to vector<4x16x32xf32>
    %10 = arith.addf %6, %9 : vector<4x16x32xf32>
    %11 = vector.extract_strided_slice %1 {offsets = [0, 0, 2], sizes = [4, 16, 32], strides = [1, 1, 1]} : vector<4x16x42xf32> to vector<4x16x32xf32>
    %12 = arith.addf %8, %11 : vector<4x16x32xf32>
    %13 = vector.extract_strided_slice %3 {offsets = [0, 0, 8], sizes = [4, 16, 32], strides = [1, 1, 1]} : vector<4x16x42xf32> to vector<4x16x32xf32>
    %14 = arith.addf %10, %13 : vector<4x16x32xf32>
    %15 = vector.extract_strided_slice %1 {offsets = [0, 0, 3], sizes = [4, 16, 32], strides = [1, 1, 1]} : vector<4x16x42xf32> to vector<4x16x32xf32>
    %16 = arith.addf %12, %15 : vector<4x16x32xf32>
    %17 = vector.extract_strided_slice %3 {offsets = [0, 0, 7], sizes = [4, 16, 32], strides = [1, 1, 1]} : vector<4x16x42xf32> to vector<4x16x32xf32>
    %18 = arith.addf %14, %17 : vector<4x16x32xf32>
    %19 = vector.extract_strided_slice %1 {offsets = [0, 0, 4], sizes = [4, 16, 32], strides = [1, 1, 1]} : vector<4x16x42xf32> to vector<4x16x32xf32>
    %20 = arith.addf %16, %19 : vector<4x16x32xf32>
    %21 = vector.extract_strided_slice %3 {offsets = [0, 0, 6], sizes = [4, 16, 32], strides = [1, 1, 1]} : vector<4x16x42xf32> to vector<4x16x32xf32>
    %22 = arith.addf %18, %21 : vector<4x16x32xf32>
    %23 = vector.extract_strided_slice %1 {offsets = [0, 0, 5], sizes = [4, 16, 32], strides = [1, 1, 1]} : vector<4x16x42xf32> to vector<4x16x32xf32>
    %24 = arith.addf %20, %23 : vector<4x16x32xf32>
    %25 = vector.extract_strided_slice %3 {offsets = [0, 0, 5], sizes = [4, 16, 32], strides = [1, 1, 1]} : vector<4x16x42xf32> to vector<4x16x32xf32>
    %26 = arith.addf %22, %25 : vector<4x16x32xf32>
    %27 = vector.extract_strided_slice %1 {offsets = [0, 0, 6], sizes = [4, 16, 32], strides = [1, 1, 1]} : vector<4x16x42xf32> to vector<4x16x32xf32>
    %28 = arith.addf %24, %27 : vector<4x16x32xf32>
    %29 = vector.extract_strided_slice %3 {offsets = [0, 0, 4], sizes = [4, 16, 32], strides = [1, 1, 1]} : vector<4x16x42xf32> to vector<4x16x32xf32>
    %30 = arith.addf %26, %29 : vector<4x16x32xf32>
    %31 = vector.extract_strided_slice %1 {offsets = [0, 0, 7], sizes = [4, 16, 32], strides = [1, 1, 1]} : vector<4x16x42xf32> to vector<4x16x32xf32>
    %32 = arith.addf %28, %31 : vector<4x16x32xf32>
    %33 = vector.extract_strided_slice %3 {offsets = [0, 0, 3], sizes = [4, 16, 32], strides = [1, 1, 1]} : vector<4x16x42xf32> to vector<4x16x32xf32>
    %34 = arith.addf %30, %33 : vector<4x16x32xf32>
    %35 = vector.extract_strided_slice %1 {offsets = [0, 0, 8], sizes = [4, 16, 32], strides = [1, 1, 1]} : vector<4x16x42xf32> to vector<4x16x32xf32>
    %36 = arith.addf %32, %35 : vector<4x16x32xf32>
    %37 = vector.extract_strided_slice %3 {offsets = [0, 0, 2], sizes = [4, 16, 32], strides = [1, 1, 1]} : vector<4x16x42xf32> to vector<4x16x32xf32>
    %38 = arith.addf %34, %37 : vector<4x16x32xf32>
    %39 = vector.extract_strided_slice %1 {offsets = [0, 0, 9], sizes = [4, 16, 32], strides = [1, 1, 1]} : vector<4x16x42xf32> to vector<4x16x32xf32>
    %40 = arith.addf %36, %39 : vector<4x16x32xf32>
    %41 = vector.extract_strided_slice %3 {offsets = [0, 0, 1], sizes = [4, 16, 32], strides = [1, 1, 1]} : vector<4x16x42xf32> to vector<4x16x32xf32>
    %42 = arith.addf %38, %41 : vector<4x16x32xf32>
    %43 = vector.extract_strided_slice %1 {offsets = [0, 0, 10], sizes = [4, 16, 32], strides = [1, 1, 1]} : vector<4x16x42xf32> to vector<4x16x32xf32>
    %44 = arith.addf %40, %43 : vector<4x16x32xf32>
    %45 = vector.extract_strided_slice %3 {offsets = [0, 0, 0], sizes = [4, 16, 32], strides = [1, 1, 1]} : vector<4x16x42xf32> to vector<4x16x32xf32>
    %46 = arith.addf %42, %45 : vector<4x16x32xf32>
    %47 = arith.mulf %4, %46 : vector<4x16x32xf32>
    %48 = arith.mulf %5, %44 : vector<4x16x32xf32>
    %49 = arith.addf %47, %48 : vector<4x16x32xf32>
    %cst_7 = arith.constant dense<0.000000e+00> : vector<16x32xf32>
    %50 = vector.multi_reduction <add>, %49, %cst_7 [0] : vector<4x16x32xf32> to vector<16x32xf32>
    %cst_8 = arith.constant 0.0119047621 : f32
    %51 = vector.broadcast %cst_8 : f32 to vector<16x32xf32>
    %52 = arith.mulf %50, %51 : vector<16x32xf32>
    %c0_9 = arith.constant 0 : index
    %c0_10 = arith.constant 0 : index
    %c0_11 = arith.constant 0 : index
    %53 = vector.load %arg4[%c0_9, %c0_10, %c0_11] : memref<1x16x32xf32, #tpu.memory_space<vmem>>, vector<1x16x32xf32>
    %54 = vector.shape_cast %53 : vector<1x16x32xf32> to vector<16x32xf32>
    %55 = vector.shape_cast %52 : vector<16x32xf32> to vector<1x16x32xf32>
    tpu.vector_store %arg4[%c0_9, %c0_10, %c0_11], %55 {strides = array<i32>} : memref<1x16x32xf32, #tpu.memory_space<vmem>>, vector<1x16x32xf32>,
    return
  }
  func.func @transform_0(%arg0: i32, %arg1: i32) -> (i32, i32, i32, i32) {
    %c0_i32 = arith.constant 0 : i32
    %c0_i32_0 = arith.constant 0 : i32
    %c0_i32_1 = arith.constant 0 : i32
    return %arg0, %c0_i32, %arg1, %c0_i32_0 : i32, i32, i32, i32
  }
  func.func @transform_1(%arg0: i32, %arg1: i32) -> (i32, i32, i32, i32) {
    %c0_i32 = arith.constant 0 : i32
    %c0_i32_0 = arith.constant 0 : i32
    %c0_i32_1 = arith.constant 0 : i32
    return %arg0, %c0_i32, %arg1, %c0_i32_0 : i32, i32, i32, i32
  }
  func.func @transform_2(%arg0: i32, %arg1: i32) -> (i32, i32, i32) {
    %c0_i32 = arith.constant 0 : i32
    %c0_i32_0 = arith.constant 0 : i32
    return %arg0, %arg1, %c0_i32 : i32, i32, i32
  }
}

</mosaic_0001>

<llo_original>
// kernel: tpu_custom_call.1
$region0: #{tpu_custom_call.1}
  #allocation0 [shape = 'u32[]', space=smem, size = 0x4, offset = 0x4, fixed_abs, tag = 'smem constant byte address 0x4 - core index']
  #allocation1 [shape = 'u32[144,128]{1,0:T(1,128)}', space=vmem, size = 0x12000, scoped, tag = 'internal scratch']
  %s0 = inlined_call_operand.hbm [shape: f32[2,4,16,32], index: 0, kind: input, shape index: {}]
  %s1 = inlined_call_operand.hbm [shape: f32[2,4,16,32], index: 1, kind: input, shape index: {}]
  %s2 = inlined_call_operand.hbm [shape: f32[2,16,32], index: 2, kind: output, shape index: {}]
  %s3 = sld [smem:[#allocation0]]
  $region49: #{tpu_custom_call.1} parent=0
    _
  %s5 = ssub.s32 1, %s3
  %s6 = scalar_select 0, %s5, %s3
  $region1: #{tpu_custom_call.1} parent=0
    #allocation2 [shape = 'u8[65536]{0}', space=vmem, size = 0x10000, scoped, tag = 'input window, operand 0']
    #allocation3 [shape = 's32[2]{0}', space=sflag, size = 0x8, scoped, tag = 'scoped memory for tpu_custom_call.1']
    #allocation4 [shape = 's32[2]{0}', space=sflag, size = 0x8, scoped, tag = 'scoped memory for tpu_custom_call.1']
    #allocation5 [shape = 'u8[65536]{0}', space=vmem, size = 0x10000, scoped, tag = 'input window, operand 1']
    #allocation6 [shape = 's32[2]{0}', space=sflag, size = 0x8, scoped, tag = 'scoped memory for tpu_custom_call.1']
    #allocation7 [shape = 'u8[16384]{0}', space=vmem, size = 0x4000, scoped, tag = 'output window, operand 0']
    %7 = vsyncpa [#allocation3], 0
    %s8 = scalar_lea.sflag [#allocation3], 1
    %9 = vsyncpa %s8, 0
    %10 = vsyncpa [#allocation6], 0
    %s11 = scalar_lea.sflag [#allocation6], 1
    %12 = vsyncpa %s11, 0
    %13 = vsyncpa [#allocation4], 0
    %s14 = scalar_lea.sflag [#allocation4], 1
    %15 = vsyncpa %s14, 0
    loop: start=0, step=1, limit=4
    $region2: #{tpu_custom_call.1} parent=1 // loop_pre_header
      _
    $region3: #{tpu_custom_call.1} parent=1 // loop_header
      %s17 = sphi 0, %s21
      %p18 = scmp.ge.s32.totalorder %s17, 4
      %s24 = sphi 0, %s36
      %s25 = sphi 0, %s32
      %s26 = sphi 0, %s24
      %s27 = sphi 0, %s25
      %s28 = sphi 0, %s26
      %s29 = sphi 0, %s27
      %s41 = sphi 0, %s43
      %s44 = sphi 0, %s41
      %s45 = sphi 0, %s44
      %s61 = sphi 0, %s45
      %s69 = sphi 0, %s71
      %s72 = sphi 0, %s69
      %s73 = sphi 0, %s72
      %s89 = sphi 0, %s73
      %s97 = sphi 0, %s99
      %s100 = sphi 0, %s97
      %s101 = sphi 0, %s100
      %s117 = sphi 0, %s101
    $region4: #{tpu_custom_call.1} parent=1 // loop_header_branch
      %20 = sbr.rel (%p18) target = $region8
    $region5: #{tpu_custom_call.1} parent=1 // loop_body
      %s22 = ssub.s32 %s17, 1
      %s23 = ssub.s32 %s17, 2
      %s30 = sadd.s32 1, %s25
      %p31 = scmp.ge.s32.totalorder %s30, 1
      %s32 = scalar_select %p31, 0, %s30
      %s33 = sadd.s32 1, %s24
      %s34 = scalar_select %p31, %s33, %s24
      %p35 = scmp.ge.s32.totalorder %s34, 2
      %s36 = scalar_select %p35, 0, %s34
      %s37 = ssub.s32 %s24, %s36
      %s38 = ssub.s32 %s25, %s32
      %s39 = sor.u32 %s37, %s38
      %p40 = scmp.eq.s32.totalorder %s39, 0
      %s42 = sadd.s32 %s41, 1
      %s43 = scalar_select %p40, %s41, %s42
      %p46 = pneg %p40
      %p47 = scmp.eq.s32.totalorder %s17, 1
      %p48 = por %p46, %p47
      %p49 = scmp.ne.s32.totalorder %s41, %s44
      %p50 = scmp.eq.s32.totalorder %s17, 0
      %p51 = por %p49, %p50
      %p52 = scmp.ne.s32.totalorder %s41, %s44
      %p53 = scmp.eq.s32.totalorder %s22, 1
      %p54 = por %p52, %p53
      %p55 = scmp.ne.s32.totalorder %s44, %s45
      %p56 = scmp.eq.s32.totalorder %s22, 0
      %p57 = por %p55, %p56
      %p58 = scmp.ne.s32.totalorder %s44, %s45
      %p59 = scmp.eq.s32.totalorder %s23, 1
      %p60 = por %p58, %p59
      %p62 = scmp.ne.s32.totalorder %s45, %s61
      %p63 = scmp.eq.s32.totalorder %s23, 0
      %p64 = por %p62, %p63
      %s65 = ssub.s32 %s24, %s36
      %s66 = ssub.s32 %s25, %s32
      %s67 = sor.u32 %s65, %s66
      %p68 = scmp.eq.s32.totalorder %s67, 0
      %s70 = sadd.s32 %s69, 1
      %s71 = scalar_select %p68, %s69, %s70
      %p74 = pneg %p68
      %p75 = scmp.eq.s32.totalorder %s17, 1
      %p76 = por %p74, %p75
      %p77 = scmp.ne.s32.totalorder %s69, %s72
      %p78 = scmp.eq.s32.totalorder %s17, 0
      %p79 = por %p77, %p78
      %p80 = scmp.ne.s32.totalorder %s69, %s72
      %p81 = scmp.eq.s32.totalorder %s22, 1
      %p82 = por %p80, %p81
      %p83 = scmp.ne.s32.totalorder %s72, %s73
      %p84 = scmp.eq.s32.totalorder %s22, 0
      %p85 = por %p83, %p84
      %p86 = scmp.ne.s32.totalorder %s72, %s73
      %p87 = scmp.eq.s32.totalorder %s23, 1
      %p88 = por %p86, %p87
      %p90 = scmp.ne.s32.totalorder %s73, %s89
      %p91 = scmp.eq.s32.totalorder %s23, 0
      %p92 = por %p90, %p91
      %s93 = ssub.s32 %s24, %s36
      %s94 = ssub.s32 %s25, %s32
      %s95 = sor.u32 %s93, %s94
      %p96 = scmp.eq.s32.totalorder %s95, 0
      %s98 = sadd.s32 %s97, 1
      %s99 = scalar_select %p96, %s97, %s98
      %p102 = pneg %p96
      %p103 = scmp.eq.s32.totalorder %s17, 1
      %p104 = por %p102, %p103
      %p105 = scmp.ne.s32.totalorder %s97, %s100
      %p106 = scmp.eq.s32.totalorder %s17, 0
      %p107 = por %p105, %p106
      %p108 = scmp.ne.s32.totalorder %s97, %s100
      %p109 = scmp.eq.s32.totalorder %s22, 1
      %p110 = por %p108, %p109
      %p111 = scmp.ne.s32.totalorder %s100, %s101
      %p112 = scmp.eq.s32.totalorder %s22, 0
      %p113 = por %p111, %p112
      %p114 = scmp.ne.s32.totalorder %s100, %s101
      %p115 = scmp.eq.s32.totalorder %s23, 1
      %p116 = por %p114, %p115
      %p118 = scmp.ne.s32.totalorder %s101, %s117
      %p119 = scmp.eq.s32.totalorder %s23, 0
      %p120 = por %p118, %p119
      %p121 = scmp.le.s32.totalorder 1, %s17
      %p122 = scmp.lt.s32.totalorder %s17, 3
      %p123 = pnand %p121, %p122
      %p124 = pneg %p123
      // Predicated region
      $region9: #{tpu_custom_call.1} parent=5 // pred_check
        _
      $region10: #{tpu_custom_call.1} parent=5 // pred_check_branch
        %126 = sbr.rel (%p123) target = $region12
      $region11: #{tpu_custom_call.1} parent=5 // pred_region
        %s127 = ssub.s32 %s17, 1
      $region12: #{tpu_custom_call.1} parent=5 // pred_fallthru
        _
      %p128 = scmp.lt.s32.totalorder %s17, 2
      // Predicated region
      $region13: #{tpu_custom_call.1} parent=5 // pred_check
        %p129 = pneg %p128
      $region14: #{tpu_custom_call.1} parent=5 // pred_check_branch
        %131 = sbr.rel (%p129) target = $region16
      $region15: #{tpu_custom_call.1} parent=5 // pred_region
        // Predicated region
        $region17: #{tpu_custom_call.1} parent=15 // pred_check
          %p132 = pneg %p51
        $region18: #{tpu_custom_call.1} parent=15 // pred_check_branch
          %134 = sbr.rel (%p132) target = $region20
        $region19: #{tpu_custom_call.1} parent=15 // pred_region
          %s135 = sand.u32 %s41, 1
          %s136 = scalar_lea.sflag [#allocation3], %s135
          %s137 = sand.u32 %s41, 1
          %s138 = smul.addr %s137, 64
          %s139 = scalar_lea.vmem [#allocation2], %s138
          %s140 = smul.u32 2, %s25
          %s142 = ssub.s32 1024, 1024
          %143 = vsyncadd %s136, %s142
          %s144 = smul.addr %s24, 8
          %s145 = sadd.s32 %s140, %s144
          %s146 = smul.addr %s145, 128
          %s147 = scalar_lea.hbm %s0, %s146
          %s148 = sshll.u32 %s139, 4
          %s149 = int_to_ptr.vmem [resolvable:$true] %s148
          %154 = dma.hbm_to_vmem [thread:$0]  %s147, 1024, %s149, %s136, 128, 128, 8
        $region20: #{tpu_custom_call.1} parent=15 // pred_fallthru
          _
        // Predicated region
        $region21: #{tpu_custom_call.1} parent=15 // pred_check
          %p155 = pneg %p79
        $region22: #{tpu_custom_call.1} parent=15 // pred_check_branch
          %157 = sbr.rel (%p155) target = $region24
        $region23: #{tpu_custom_call.1} parent=15 // pred_region
          %s158 = sand.u32 %s69, 1
          %s159 = scalar_lea.sflag [#allocation6], %s158
          %s160 = sand.u32 %s69, 1
          %s161 = smul.addr %s160, 64
          %s162 = scalar_lea.vmem [#allocation5], %s161
          %s163 = smul.u32 2, %s25
          %s165 = ssub.s32 1024, 1024
          %166 = vsyncadd %s159, %s165
          %s167 = smul.addr %s24, 8
          %s168 = sadd.s32 %s163, %s167
          %s169 = smul.addr %s168, 128
          %s170 = scalar_lea.hbm %s1, %s169
          %s171 = sshll.u32 %s162, 4
          %s172 = int_to_ptr.vmem [resolvable:$true] %s171
          %177 = dma.hbm_to_vmem [thread:$0]  %s170, 1024, %s172, %s159, 128, 128, 8
        $region24: #{tpu_custom_call.1} parent=15 // pred_fallthru
          _
      $region16: #{tpu_custom_call.1} parent=5 // pred_fallthru
        _
      %p178 = scmp.le.s32.totalorder 1, %s17
      %p179 = scmp.lt.s32.totalorder %s17, 3
      %p180 = pnand %p178, %p179
      %p181 = pneg %p180
      // Predicated region
      $region25: #{tpu_custom_call.1} parent=5 // pred_check
        _
      $region26: #{tpu_custom_call.1} parent=5 // pred_check_branch
        %183 = sbr.rel (%p180) target = $region28
      $region27: #{tpu_custom_call.1} parent=5 // pred_region
        %s184 = ssub.s32 %s17, 1
        %s185 = sand.u32 %s44, 1
        %s186 = scalar_lea.sflag [#allocation3], %s185
        %s187 = sand.u32 %s44, 1
        %s188 = smul.addr %s187, 64
        %s189 = scalar_lea.vmem [#allocation2], %s188
        // Predicated region
        $region29: #{tpu_custom_call.1} parent=27 // pred_check
          %p190 = pneg %p57
        $region30: #{tpu_custom_call.1} parent=27 // pred_check_branch
          %192 = sbr.rel (%p190) target = $region32
        $region31: #{tpu_custom_call.1} parent=27 // pred_region
          %193 = dma.done %s186, 1024
        $region32: #{tpu_custom_call.1} parent=27 // pred_fallthru
          _
        %s194 = sand.u32 %s72, 1
        %s195 = scalar_lea.sflag [#allocation6], %s194
        %s196 = sand.u32 %s72, 1
        %s197 = smul.addr %s196, 64
        %s198 = scalar_lea.vmem [#allocation5], %s197
        // Predicated region
        $region33: #{tpu_custom_call.1} parent=27 // pred_check
          %p199 = pneg %p85
        $region34: #{tpu_custom_call.1} parent=27 // pred_check_branch
          %201 = sbr.rel (%p199) target = $region36
        $region35: #{tpu_custom_call.1} parent=27 // pred_region
          %202 = dma.done %s195, 1024
        $region36: #{tpu_custom_call.1} parent=27 // pred_fallthru
          _
        %s203 = sand.u32 %s44, 1
        %s204 = scalar_lea.sflag [#allocation3], %s203
        %s205 = sand.u32 %s44, 1
        %s206 = smul.addr %s205, 64
        %s207 = scalar_lea.vmem [#allocation2], %s206
        %p208 = pneg %p57
        %p209 = pneg %p54
        %s210 = sand.u32 %s72, 1
        %s211 = scalar_lea.sflag [#allocation6], %s210
        %s212 = sand.u32 %s72, 1
        %s213 = smul.addr %s212, 64
        %s214 = scalar_lea.vmem [#allocation5], %s213
        %p215 = pneg %p85
        %p216 = pneg %p82
        %p217 = pneg %p113
        %p218 = pneg %p110
        %s219 = sand.u32 %s100, 1
        %s220 = scalar_lea.sflag [#allocation4], %s219
        %s221 = sand.u32 %s100, 1
        %s222 = smul.addr %s221, 16
        %s223 = scalar_lea.vmem [#allocation7], %s222
        %s224 = smul.u32 2, %s27
        %s225 = smul.u32 2, %s27
        %s226 = smul.u32 2, %s27
        %v227 = vld [vmem:[%s189] sm:$0xff]
        %v228 = vld [vmem:[%s189 + $0x8] sm:$0xff]
        %v229 = vld [vmem:[%s189 + $0x10] sm:$0xff]
        %v230 = vld [vmem:[%s189 + $0x18] sm:$0xff]
        %v231 = vld [vmem:[%s189 + $0x20] sm:$0xff]
        %v232 = vld [vmem:[%s189 + $0x28] sm:$0xff]
        %v233 = vld [vmem:[%s189 + $0x30] sm:$0xff]
        %v234 = vld [vmem:[%s189 + $0x38] sm:$0xff]
        %v235 = vld [vmem:[%s198] sm:$0xff]
        %v236 = vld [vmem:[%s198 + $0x8] sm:$0xff]
        %v237 = vld [vmem:[%s198 + $0x10] sm:$0xff]
        %v238 = vld [vmem:[%s198 + $0x18] sm:$0xff]
        %v239 = vld [vmem:[%s198 + $0x20] sm:$0xff]
        %v240 = vld [vmem:[%s198 + $0x28] sm:$0xff]
        %v241 = vld [vmem:[%s198 + $0x30] sm:$0xff]
        %v242 = vld [vmem:[%s198 + $0x38] sm:$0xff]
        %vm243 = vcmask 261120
        %v244 = vsel %vm243, %v227, 0.0
        %v245 = vsel %vm243, %v228, 0.0
        %v246 = vsel %vm243, %v229, 0.0
        %v247 = vsel %vm243, %v230, 0.0
        %v248 = vsel %vm243, %v231, 0.0
        %v249 = vsel %vm243, %v232, 0.0
        %v250 = vsel %vm243, %v233, 0.0
        %v251 = vsel %vm243, %v234, 0.0
        %260 = vrot.lane.b32.xlu0 %v235, 10
        %v261 = vpop.permute.xlu0 %260
        %262 = vrot.lane.b32.xlu0 %v236, 10
        %v263 = vpop.permute.xlu0 %262
        %264 = vrot.lane.b32.xlu0 %v237, 10
        %v265 = vpop.permute.xlu0 %264
        %266 = vrot.lane.b32.xlu0 %v238, 10
        %v267 = vpop.permute.xlu0 %266
        %268 = vrot.lane.b32.xlu0 %v239, 10
        %v269 = vpop.permute.xlu0 %268
        %270 = vrot.lane.b32.xlu0 %v240, 10
        %v271 = vpop.permute.xlu0 %270
        %272 = vrot.lane.b32.xlu0 %v241, 10
        %v273 = vpop.permute.xlu0 %272
        %274 = vrot.lane.b32.xlu0 %v242, 10
        %v275 = vpop.permute.xlu0 %274
        %vm284 = vcmask 80896
        %v285 = vsel %vm284, 0.0, %v261
        %v286 = vsel %vm284, 0.0, %v263
        %v287 = vsel %vm284, 0.0, %v265
        %v288 = vsel %vm284, 0.0, %v267
        %v289 = vsel %vm284, 0.0, %v269
        %v290 = vsel %vm284, 0.0, %v271
        %v291 = vsel %vm284, 0.0, %v273
        %v292 = vsel %vm284, 0.0, %v275
        %301 = vrot.lane.b32.xlu0 %v244, 127
        %v302 = vpop.permute.xlu0 %301
        %303 = vrot.lane.b32.xlu0 %v245, 127
        %v304 = vpop.permute.xlu0 %303
        %305 = vrot.lane.b32.xlu0 %v246, 127
        %v306 = vpop.permute.xlu0 %305
        %307 = vrot.lane.b32.xlu0 %v247, 127
        %v308 = vpop.permute.xlu0 %307
        %309 = vrot.lane.b32.xlu0 %v248, 127
        %v310 = vpop.permute.xlu0 %309
        %311 = vrot.lane.b32.xlu0 %v249, 127
        %v312 = vpop.permute.xlu0 %311
        %313 = vrot.lane.b32.xlu0 %v250, 127
        %v314 = vpop.permute.xlu0 %313
        %315 = vrot.lane.b32.xlu0 %v251, 127
        %v316 = vpop.permute.xlu0 %315
        %v325 = vadd.f32 %v227, %v302
        %v326 = vadd.f32 %v228, %v304
        %v327 = vadd.f32 %v229, %v306
        %v328 = vadd.f32 %v230, %v308
        %v329 = vadd.f32 %v231, %v310
        %v330 = vadd.f32 %v232, %v312
        %v331 = vadd.f32 %v233, %v314
        %v332 = vadd.f32 %v234, %v316
        %v333 = vadd.f32 %v285, 0.0
        %v334 = vadd.f32 %v286, 0.0
        %v335 = vadd.f32 %v287, 0.0
        %v336 = vadd.f32 %v288, 0.0
        %v337 = vadd.f32 %v289, 0.0
        %v338 = vadd.f32 %v290, 0.0
        %v339 = vadd.f32 %v291, 0.0
        %v340 = vadd.f32 %v292, 0.0
        %341 = vrot.lane.b32.xlu0 %v244, 126
        %v342 = vpop.permute.xlu0 %341
        %343 = vrot.lane.b32.xlu0 %v245, 126
        %v344 = vpop.permute.xlu0 %343
        %345 = vrot.lane.b32.xlu0 %v246, 126
        %v346 = vpop.permute.xlu0 %345
        %347 = vrot.lane.b32.xlu0 %v247, 126
        %v348 = vpop.permute.xlu0 %347
        %349 = vrot.lane.b32.xlu0 %v248, 126
        %v350 = vpop.permute.xlu0 %349
        %351 = vrot.lane.b32.xlu0 %v249, 126
        %v352 = vpop.permute.xlu0 %351
        %353 = vrot.lane.b32.xlu0 %v250, 126
        %v354 = vpop.permute.xlu0 %353
        %355 = vrot.lane.b32.xlu0 %v251, 126
        %v356 = vpop.permute.xlu0 %355
        %v365 = vadd.f32 %v325, %v342
        %v366 = vadd.f32 %v326, %v344
        %v367 = vadd.f32 %v327, %v346
        %v368 = vadd.f32 %v328, %v348
        %v369 = vadd.f32 %v329, %v350
        %v370 = vadd.f32 %v330, %v352
        %v371 = vadd.f32 %v331, %v354
        %v372 = vadd.f32 %v332, %v356
        %381 = vrot.lane.b32.xlu0 %v285, 1
        %v382 = vpop.permute.xlu0 %381
        %383 = vrot.lane.b32.xlu0 %v286, 1
        %v384 = vpop.permute.xlu0 %383
        %385 = vrot.lane.b32.xlu0 %v287, 1
        %v386 = vpop.permute.xlu0 %385
        %387 = vrot.lane.b32.xlu0 %v288, 1
        %v388 = vpop.permute.xlu0 %387
        %389 = vrot.lane.b32.xlu0 %v289, 1
        %v390 = vpop.permute.xlu0 %389
        %391 = vrot.lane.b32.xlu0 %v290, 1
        %v392 = vpop.permute.xlu0 %391
        %393 = vrot.lane.b32.xlu0 %v291, 1
        %v394 = vpop.permute.xlu0 %393
        %395 = vrot.lane.b32.xlu0 %v292, 1
        %v396 = vpop.permute.xlu0 %395
        %v405 = vadd.f32 %v333, %v382
        %v406 = vadd.f32 %v334, %v384
        %v407 = vadd.f32 %v335, %v386
        %v408 = vadd.f32 %v336, %v388
        %v409 = vadd.f32 %v337, %v390
        %v410 = vadd.f32 %v338, %v392
        %v411 = vadd.f32 %v339, %v394
        %v412 = vadd.f32 %v340, %v396
        %413 = vrot.lane.b32.xlu0 %v244, 125
        %v414 = vpop.permute.xlu0 %413
        %415 = vrot.lane.b32.xlu0 %v245, 125
        %v416 = vpop.permute.xlu0 %415
        %417 = vrot.lane.b32.xlu0 %v246, 125
        %v418 = vpop.permute.xlu0 %417
        %419 = vrot.lane.b32.xlu0 %v247, 125
        %v420 = vpop.permute.xlu0 %419
        %421 = vrot.lane.b32.xlu0 %v248, 125
        %v422 = vpop.permute.xlu0 %421
        %423 = vrot.lane.b32.xlu0 %v249, 125
        %v424 = vpop.permute.xlu0 %423
        %425 = vrot.lane.b32.xlu0 %v250, 125
        %v426 = vpop.permute.xlu0 %425
        %427 = vrot.lane.b32.xlu0 %v251, 125
        %v428 = vpop.permute.xlu0 %427
        %v437 = vadd.f32 %v365, %v414
        %v438 = vadd.f32 %v366, %v416
        %v439 = vadd.f32 %v367, %v418
        %v440 = vadd.f32 %v368, %v420
        %v441 = vadd.f32 %v369, %v422
        %v442 = vadd.f32 %v370, %v424
        %v443 = vadd.f32 %v371, %v426
        %v444 = vadd.f32 %v372, %v428
        %445 = vrot.lane.b32.xlu0 %v285, 2
        %v446 = vpop.permute.xlu0 %445
        %447 = vrot.lane.b32.xlu0 %v286, 2
        %v448 = vpop.permute.xlu0 %447
        %449 = vrot.lane.b32.xlu0 %v287, 2
        %v450 = vpop.permute.xlu0 %449
        %451 = vrot.lane.b32.xlu0 %v288, 2
        %v452 = vpop.permute.xlu0 %451
        %453 = vrot.lane.b32.xlu0 %v289, 2
        %v454 = vpop.permute.xlu0 %453
        %455 = vrot.lane.b32.xlu0 %v290, 2
        %v456 = vpop.permute.xlu0 %455
        %457 = vrot.lane.b32.xlu0 %v291, 2
        %v458 = vpop.permute.xlu0 %457
        %459 = vrot.lane.b32.xlu0 %v292, 2
        %v460 = vpop.permute.xlu0 %459
        %v469 = vadd.f32 %v405, %v446
        %v470 = vadd.f32 %v406, %v448
        %v471 = vadd.f32 %v407, %v450
        %v472 = vadd.f32 %v408, %v452
        %v473 = vadd.f32 %v409, %v454
        %v474 = vadd.f32 %v410, %v456
        %v475 = vadd.f32 %v411, %v458
        %v476 = vadd.f32 %v412, %v460
        %477 = vrot.lane.b32.xlu0 %v244, 124
        %v478 = vpop.permute.xlu0 %477
        %479 = vrot.lane.b32.xlu0 %v245, 124
        %v480 = vpop.permute.xlu0 %479
        %481 = vrot.lane.b32.xlu0 %v246, 124
        %v482 = vpop.permute.xlu0 %481
        %483 = vrot.lane.b32.xlu0 %v247, 124
        %v484 = vpop.permute.xlu0 %483
        %485 = vrot.lane.b32.xlu0 %v248, 124
        %v486 = vpop.permute.xlu0 %485
        %487 = vrot.lane.b32.xlu0 %v249, 124
        %v488 = vpop.permute.xlu0 %487
        %489 = vrot.lane.b32.xlu0 %v250, 124
        %v490 = vpop.permute.xlu0 %489
        %491 = vrot.lane.b32.xlu0 %v251, 124
        %v492 = vpop.permute.xlu0 %491
        %v501 = vadd.f32 %v437, %v478
        %v502 = vadd.f32 %v438, %v480
        %v503 = vadd.f32 %v439, %v482
        %v504 = vadd.f32 %v440, %v484
        %v505 = vadd.f32 %v441, %v486
        %v506 = vadd.f32 %v442, %v488
        %v507 = vadd.f32 %v443, %v490
        %v508 = vadd.f32 %v444, %v492
        %509 = vrot.lane.b32.xlu0 %v285, 3
        %v510 = vpop.permute.xlu0 %509
        %511 = vrot.lane.b32.xlu0 %v286, 3
        %v512 = vpop.permute.xlu0 %511
        %513 = vrot.lane.b32.xlu0 %v287, 3
        %v514 = vpop.permute.xlu0 %513
        %515 = vrot.lane.b32.xlu0 %v288, 3
        %v516 = vpop.permute.xlu0 %515
        %517 = vrot.lane.b32.xlu0 %v289, 3
        %v518 = vpop.permute.xlu0 %517
        %519 = vrot.lane.b32.xlu0 %v290, 3
        %v520 = vpop.permute.xlu0 %519
        %521 = vrot.lane.b32.xlu0 %v291, 3
        %v522 = vpop.permute.xlu0 %521
        %523 = vrot.lane.b32.xlu0 %v292, 3
        %v524 = vpop.permute.xlu0 %523
        %v533 = vadd.f32 %v469, %v510
        %v534 = vadd.f32 %v470, %v512
        %v535 = vadd.f32 %v471, %v514
        %v536 = vadd.f32 %v472, %v516
        %v537 = vadd.f32 %v473, %v518
        %v538 = vadd.f32 %v474, %v520
        %v539 = vadd.f32 %v475, %v522
        %v540 = vadd.f32 %v476, %v524
        %541 = vrot.lane.b32.xlu0 %v244, 123
        %v542 = vpop.permute.xlu0 %541
        %543 = vrot.lane.b32.xlu0 %v245, 123
        %v544 = vpop.permute.xlu0 %543
        %545 = vrot.lane.b32.xlu0 %v246, 123
        %v546 = vpop.permute.xlu0 %545
        %547 = vrot.lane.b32.xlu0 %v247, 123
        %v548 = vpop.permute.xlu0 %547
        %549 = vrot.lane.b32.xlu0 %v248, 123
        %v550 = vpop.permute.xlu0 %549
        %551 = vrot.lane.b32.xlu0 %v249, 123
        %v552 = vpop.permute.xlu0 %551
        %553 = vrot.lane.b32.xlu0 %v250, 123
        %v554 = vpop.permute.xlu0 %553
        %555 = vrot.lane.b32.xlu0 %v251, 123
        %v556 = vpop.permute.xlu0 %555
        %v565 = vadd.f32 %v501, %v542
        %v566 = vadd.f32 %v502, %v544
        %v567 = vadd.f32 %v503, %v546
        %v568 = vadd.f32 %v504, %v548
        %v569 = vadd.f32 %v505, %v550
        %v570 = vadd.f32 %v506, %v552
        %v571 = vadd.f32 %v507, %v554
        %v572 = vadd.f32 %v508, %v556
        %573 = vrot.lane.b32.xlu0 %v285, 4
        %v574 = vpop.permute.xlu0 %573
        %575 = vrot.lane.b32.xlu0 %v286, 4
        %v576 = vpop.permute.xlu0 %575
        %577 = vrot.lane.b32.xlu0 %v287, 4
        %v578 = vpop.permute.xlu0 %577
        %579 = vrot.lane.b32.xlu0 %v288, 4
        %v580 = vpop.permute.xlu0 %579
        %581 = vrot.lane.b32.xlu0 %v289, 4
        %v582 = vpop.permute.xlu0 %581
        %583 = vrot.lane.b32.xlu0 %v290, 4
        %v584 = vpop.permute.xlu0 %583
        %585 = vrot.lane.b32.xlu0 %v291, 4
        %v586 = vpop.permute.xlu0 %585
        %587 = vrot.lane.b32.xlu0 %v292, 4
        %v588 = vpop.permute.xlu0 %587
        %v597 = vadd.f32 %v533, %v574
        %v598 = vadd.f32 %v534, %v576
        %v599 = vadd.f32 %v535, %v578
        %v600 = vadd.f32 %v536, %v580
        %v601 = vadd.f32 %v537, %v582
        %v602 = vadd.f32 %v538, %v584
        %v603 = vadd.f32 %v539, %v586
        %v604 = vadd.f32 %v540, %v588
        %605 = vrot.lane.b32.xlu0 %v244, 122
        %v606 = vpop.permute.xlu0 %605
        %607 = vrot.lane.b32.xlu0 %v245, 122
        %v608 = vpop.permute.xlu0 %607
        %609 = vrot.lane.b32.xlu0 %v246, 122
        %v610 = vpop.permute.xlu0 %609
        %611 = vrot.lane.b32.xlu0 %v247, 122
        %v612 = vpop.permute.xlu0 %611
        %613 = vrot.lane.b32.xlu0 %v248, 122
        %v614 = vpop.permute.xlu0 %613
        %615 = vrot.lane.b32.xlu0 %v249, 122
        %v616 = vpop.permute.xlu0 %615
        %617 = vrot.lane.b32.xlu0 %v250, 122
        %v618 = vpop.permute.xlu0 %617
        %619 = vrot.lane.b32.xlu0 %v251, 122
        %v620 = vpop.permute.xlu0 %619
        %v629 = vadd.f32 %v565, %v606
        %v630 = vadd.f32 %v566, %v608
        %v631 = vadd.f32 %v567, %v610
        %v632 = vadd.f32 %v568, %v612
        %v633 = vadd.f32 %v569, %v614
        %v634 = vadd.f32 %v570, %v616
        %v635 = vadd.f32 %v571, %v618
        %v636 = vadd.f32 %v572, %v620
        %637 = vrot.lane.b32.xlu0 %v285, 5
        %v638 = vpop.permute.xlu0 %637
        %639 = vrot.lane.b32.xlu0 %v286, 5
        %v640 = vpop.permute.xlu0 %639
        %641 = vrot.lane.b32.xlu0 %v287, 5
        %v642 = vpop.permute.xlu0 %641
        %643 = vrot.lane.b32.xlu0 %v288, 5
        %v644 = vpop.permute.xlu0 %643
        %645 = vrot.lane.b32.xlu0 %v289, 5
        %v646 = vpop.permute.xlu0 %645
        %647 = vrot.lane.b32.xlu0 %v290, 5
        %v648 = vpop.permute.xlu0 %647
        %649 = vrot.lane.b32.xlu0 %v291, 5
        %v650 = vpop.permute.xlu0 %649
        %651 = vrot.lane.b32.xlu0 %v292, 5
        %v652 = vpop.permute.xlu0 %651
        %v661 = vadd.f32 %v597, %v638
        %v662 = vadd.f32 %v598, %v640
        %v663 = vadd.f32 %v599, %v642
        %v664 = vadd.f32 %v600, %v644
        %v665 = vadd.f32 %v601, %v646
        %v666 = vadd.f32 %v602, %v648
        %v667 = vadd.f32 %v603, %v650
        %v668 = vadd.f32 %v604, %v652
        %669 = vrot.lane.b32.xlu0 %v244, 121
        %v670 = vpop.permute.xlu0 %669
        %671 = vrot.lane.b32.xlu0 %v245, 121
        %v672 = vpop.permute.xlu0 %671
        %673 = vrot.lane.b32.xlu0 %v246, 121
        %v674 = vpop.permute.xlu0 %673
        %675 = vrot.lane.b32.xlu0 %v247, 121
        %v676 = vpop.permute.xlu0 %675
        %677 = vrot.lane.b32.xlu0 %v248, 121
        %v678 = vpop.permute.xlu0 %677
        %679 = vrot.lane.b32.xlu0 %v249, 121
        %v680 = vpop.permute.xlu0 %679
        %681 = vrot.lane.b32.xlu0 %v250, 121
        %v682 = vpop.permute.xlu0 %681
        %683 = vrot.lane.b32.xlu0 %v251, 121
        %v684 = vpop.permute.xlu0 %683
        %v693 = vadd.f32 %v629, %v670
        %v694 = vadd.f32 %v630, %v672
        %v695 = vadd.f32 %v631, %v674
        %v696 = vadd.f32 %v632, %v676
        %v697 = vadd.f32 %v633, %v678
        %v698 = vadd.f32 %v634, %v680
        %v699 = vadd.f32 %v635, %v682
        %v700 = vadd.f32 %v636, %v684
        %701 = vrot.lane.b32.xlu0 %v285, 6
        %v702 = vpop.permute.xlu0 %701
        %703 = vrot.lane.b32.xlu0 %v286, 6
        %v704 = vpop.permute.xlu0 %703
        %705 = vrot.lane.b32.xlu0 %v287, 6
        %v706 = vpop.permute.xlu0 %705
        %707 = vrot.lane.b32.xlu0 %v288, 6
        %v708 = vpop.permute.xlu0 %707
        %709 = vrot.lane.b32.xlu0 %v289, 6
        %v710 = vpop.permute.xlu0 %709
        %711 = vrot.lane.b32.xlu0 %v290, 6
        %v712 = vpop.permute.xlu0 %711
        %713 = vrot.lane.b32.xlu0 %v291, 6
        %v714 = vpop.permute.xlu0 %713
        %715 = vrot.lane.b32.xlu0 %v292, 6
        %v716 = vpop.permute.xlu0 %715
        %v725 = vadd.f32 %v661, %v702
        %v726 = vadd.f32 %v662, %v704
        %v727 = vadd.f32 %v663, %v706
        %v728 = vadd.f32 %v664, %v708
        %v729 = vadd.f32 %v665, %v710
        %v730 = vadd.f32 %v666, %v712
        %v731 = vadd.f32 %v667, %v714
        %v732 = vadd.f32 %v668, %v716
        %733 = vrot.lane.b32.xlu0 %v244, 120
        %v734 = vpop.permute.xlu0 %733
        %735 = vrot.lane.b32.xlu0 %v245, 120
        %v736 = vpop.permute.xlu0 %735
        %737 = vrot.lane.b32.xlu0 %v246, 120
        %v738 = vpop.permute.xlu0 %737
        %739 = vrot.lane.b32.xlu0 %v247, 120
        %v740 = vpop.permute.xlu0 %739
        %741 = vrot.lane.b32.xlu0 %v248, 120
        %v742 = vpop.permute.xlu0 %741
        %743 = vrot.lane.b32.xlu0 %v249, 120
        %v744 = vpop.permute.xlu0 %743
        %745 = vrot.lane.b32.xlu0 %v250, 120
        %v746 = vpop.permute.xlu0 %745
        %747 = vrot.lane.b32.xlu0 %v251, 120
        %v748 = vpop.permute.xlu0 %747
        %v757 = vadd.f32 %v693, %v734
        %v758 = vadd.f32 %v694, %v736
        %v759 = vadd.f32 %v695, %v738
        %v760 = vadd.f32 %v696, %v740
        %v761 = vadd.f32 %v697, %v742
        %v762 = vadd.f32 %v698, %v744
        %v763 = vadd.f32 %v699, %v746
        %v764 = vadd.f32 %v700, %v748
        %765 = vrot.lane.b32.xlu0 %v285, 7
        %v766 = vpop.permute.xlu0 %765
        %767 = vrot.lane.b32.xlu0 %v286, 7
        %v768 = vpop.permute.xlu0 %767
        %769 = vrot.lane.b32.xlu0 %v287, 7
        %v770 = vpop.permute.xlu0 %769
        %771 = vrot.lane.b32.xlu0 %v288, 7
        %v772 = vpop.permute.xlu0 %771
        %773 = vrot.lane.b32.xlu0 %v289, 7
        %v774 = vpop.permute.xlu0 %773
        %775 = vrot.lane.b32.xlu0 %v290, 7
        %v776 = vpop.permute.xlu0 %775
        %777 = vrot.lane.b32.xlu0 %v291, 7
        %v778 = vpop.permute.xlu0 %777
        %779 = vrot.lane.b32.xlu0 %v292, 7
        %v780 = vpop.permute.xlu0 %779
        %v789 = vadd.f32 %v725, %v766
        %v790 = vadd.f32 %v726, %v768
        %v791 = vadd.f32 %v727, %v770
        %v792 = vadd.f32 %v728, %v772
        %v793 = vadd.f32 %v729, %v774
        %v794 = vadd.f32 %v730, %v776
        %v795 = vadd.f32 %v731, %v778
        %v796 = vadd.f32 %v732, %v780
        %797 = vrot.lane.b32.xlu0 %v244, 119
        %v798 = vpop.permute.xlu0 %797
        %799 = vrot.lane.b32.xlu0 %v245, 119
        %v800 = vpop.permute.xlu0 %799
        %801 = vrot.lane.b32.xlu0 %v246, 119
        %v802 = vpop.permute.xlu0 %801
        %803 = vrot.lane.b32.xlu0 %v247, 119
        %v804 = vpop.permute.xlu0 %803
        %805 = vrot.lane.b32.xlu0 %v248, 119
        %v806 = vpop.permute.xlu0 %805
        %807 = vrot.lane.b32.xlu0 %v249, 119
        %v808 = vpop.permute.xlu0 %807
        %809 = vrot.lane.b32.xlu0 %v250, 119
        %v810 = vpop.permute.xlu0 %809
        %811 = vrot.lane.b32.xlu0 %v251, 119
        %v812 = vpop.permute.xlu0 %811
        %v821 = vadd.f32 %v757, %v798
        %v822 = vadd.f32 %v758, %v800
        %v823 = vadd.f32 %v759, %v802
        %v824 = vadd.f32 %v760, %v804
        %v825 = vadd.f32 %v761, %v806
        %v826 = vadd.f32 %v762, %v808
        %v827 = vadd.f32 %v763, %v810
        %v828 = vadd.f32 %v764, %v812
        %829 = vrot.lane.b32.xlu0 %v285, 8
        %v830 = vpop.permute.xlu0 %829
        %831 = vrot.lane.b32.xlu0 %v286, 8
        %v832 = vpop.permute.xlu0 %831
        %833 = vrot.lane.b32.xlu0 %v287, 8
        %v834 = vpop.permute.xlu0 %833
        %835 = vrot.lane.b32.xlu0 %v288, 8
        %v836 = vpop.permute.xlu0 %835
        %837 = vrot.lane.b32.xlu0 %v289, 8
        %v838 = vpop.permute.xlu0 %837
        %839 = vrot.lane.b32.xlu0 %v290, 8
        %v840 = vpop.permute.xlu0 %839
        %841 = vrot.lane.b32.xlu0 %v291, 8
        %v842 = vpop.permute.xlu0 %841
        %843 = vrot.lane.b32.xlu0 %v292, 8
        %v844 = vpop.permute.xlu0 %843
        %v853 = vadd.f32 %v789, %v830
        %v854 = vadd.f32 %v790, %v832
        %v855 = vadd.f32 %v791, %v834
        %v856 = vadd.f32 %v792, %v836
        %v857 = vadd.f32 %v793, %v838
        %v858 = vadd.f32 %v794, %v840
        %v859 = vadd.f32 %v795, %v842
        %v860 = vadd.f32 %v796, %v844
        %861 = vrot.lane.b32.xlu0 %v244, 118
        %v862 = vpop.permute.xlu0 %861
        %863 = vrot.lane.b32.xlu0 %v245, 118
        %v864 = vpop.permute.xlu0 %863
        %865 = vrot.lane.b32.xlu0 %v246, 118
        %v866 = vpop.permute.xlu0 %865
        %867 = vrot.lane.b32.xlu0 %v247, 118
        %v868 = vpop.permute.xlu0 %867
        %869 = vrot.lane.b32.xlu0 %v248, 118
        %v870 = vpop.permute.xlu0 %869
        %871 = vrot.lane.b32.xlu0 %v249, 118
        %v872 = vpop.permute.xlu0 %871
        %873 = vrot.lane.b32.xlu0 %v250, 118
        %v874 = vpop.permute.xlu0 %873
        %875 = vrot.lane.b32.xlu0 %v251, 118
        %v876 = vpop.permute.xlu0 %875
        %v885 = vadd.f32 %v821, %v862
        %v886 = vadd.f32 %v822, %v864
        %v887 = vadd.f32 %v823, %v866
        %v888 = vadd.f32 %v824, %v868
        %v889 = vadd.f32 %v825, %v870
        %v890 = vadd.f32 %v826, %v872
        %v891 = vadd.f32 %v827, %v874
        %v892 = vadd.f32 %v828, %v876
        %893 = vrot.lane.b32.xlu0 %v285, 9
        %v894 = vpop.permute.xlu0 %893
        %895 = vrot.lane.b32.xlu0 %v286, 9
        %v896 = vpop.permute.xlu0 %895
        %897 = vrot.lane.b32.xlu0 %v287, 9
        %v898 = vpop.permute.xlu0 %897
        %899 = vrot.lane.b32.xlu0 %v288, 9
        %v900 = vpop.permute.xlu0 %899
        %901 = vrot.lane.b32.xlu0 %v289, 9
        %v902 = vpop.permute.xlu0 %901
        %903 = vrot.lane.b32.xlu0 %v290, 9
        %v904 = vpop.permute.xlu0 %903
        %905 = vrot.lane.b32.xlu0 %v291, 9
        %v906 = vpop.permute.xlu0 %905
        %907 = vrot.lane.b32.xlu0 %v292, 9
        %v908 = vpop.permute.xlu0 %907
        %v917 = vadd.f32 %v853, %v894
        %v918 = vadd.f32 %v854, %v896
        %v919 = vadd.f32 %v855, %v898
        %v920 = vadd.f32 %v856, %v900
        %v921 = vadd.f32 %v857, %v902
        %v922 = vadd.f32 %v858, %v904
        %v923 = vadd.f32 %v859, %v906
        %v924 = vadd.f32 %v860, %v908
        %933 = vrot.lane.b32.xlu0 %v917, 119
        %v934 = vpop.permute.xlu0 %933
        %935 = vrot.lane.b32.xlu0 %v918, 119
        %v936 = vpop.permute.xlu0 %935
        %937 = vrot.lane.b32.xlu0 %v919, 119
        %v938 = vpop.permute.xlu0 %937
        %939 = vrot.lane.b32.xlu0 %v920, 119
        %v940 = vpop.permute.xlu0 %939
        %941 = vrot.lane.b32.xlu0 %v921, 119
        %v942 = vpop.permute.xlu0 %941
        %943 = vrot.lane.b32.xlu0 %v922, 119
        %v944 = vpop.permute.xlu0 %943
        %945 = vrot.lane.b32.xlu0 %v923, 119
        %v946 = vpop.permute.xlu0 %945
        %947 = vrot.lane.b32.xlu0 %v924, 119
        %v948 = vpop.permute.xlu0 %947
        %v957 = vmul.f32 %v227, %v934
        %v958 = vmul.f32 %v228, %v936
        %v959 = vmul.f32 %v229, %v938
        %v960 = vmul.f32 %v230, %v940
        %v961 = vmul.f32 %v231, %v942
        %v962 = vmul.f32 %v232, %v944
        %v963 = vmul.f32 %v233, %v946
        %v964 = vmul.f32 %v234, %v948
        %v965 = vmul.f32 %v235, %v885
        %v966 = vmul.f32 %v236, %v886
        %v967 = vmul.f32 %v237, %v887
        %v968 = vmul.f32 %v238, %v888
        %v969 = vmul.f32 %v239, %v889
        %v970 = vmul.f32 %v240, %v890
        %v971 = vmul.f32 %v241, %v891
        %v972 = vmul.f32 %v242, %v892
        %v973 = vadd.f32 %v957, %v965
        %v974 = vadd.f32 %v958, %v966
        %v975 = vadd.f32 %v959, %v967
        %v976 = vadd.f32 %v960, %v968
        %v977 = vadd.f32 %v961, %v969
        %v978 = vadd.f32 %v962, %v970
        %v979 = vadd.f32 %v963, %v971
        %v980 = vadd.f32 %v964, %v972
        %v981 = vsel %vm243, %v973, 0.0
        %v982 = vsel %vm243, %v975, 0.0
        %v983 = vadd.f32 %v981, %v982
        %v984 = vsel %vm243, %v977, 0.0
        %v985 = vadd.f32 %v983, %v984
        %v986 = vsel %vm243, %v979, 0.0
        %v987 = vadd.f32 %v985, %v986
        %v988 = vsel %vm243, %v974, 0.0
        %v989 = vsel %vm243, %v976, 0.0
        %v990 = vadd.f32 %v988, %v989
        %v991 = vsel %vm243, %v978, 0.0
        %v992 = vadd.f32 %v990, %v991
        %v993 = vsel %vm243, %v980, 0.0
        %v994 = vadd.f32 %v992, %v993
        %v995 = vmul.f32 %v987, 0.011904762
        %v996 = vmul.f32 %v994, 0.011904762
        %997 = vst.msk [vmem:[%s223] sm:$0xff] %vm243, %v995
        %998 = vst.msk [vmem:[%s223 + $0x8] sm:$0xff] %vm243, %v996
        %s999 = sand.u32 %s100, 1
        %s1000 = scalar_lea.sflag [#allocation4], %s999
        %s1001 = sand.u32 %s100, 1
        %s1002 = smul.addr %s1001, 16
        %s1003 = scalar_lea.vmem [#allocation7], %s1002
        // Predicated region
        $region37: #{tpu_custom_call.1} parent=27 // pred_check
          %p1004 = pneg %p110
        $region38: #{tpu_custom_call.1} parent=27 // pred_check_branch
          %1006 = sbr.rel (%p1004) target = $region40
        $region39: #{tpu_custom_call.1} parent=27 // pred_region
          %s1007 = smul.u32 2, %s27
          %s1009 = ssub.s32 256, 256
          %1010 = vsyncadd %s1000, %s1009
          %s1011 = smul.addr %s26, 2
          %s1012 = sadd.s32 %s1007, %s1011
          %s1013 = smul.addr %s1012, 128
          %s1014 = scalar_lea.hbm %s2, %s1013
          %s1015 = sshll.u32 %s1003, 4
          %s1016 = int_to_ptr.vmem [resolvable:$true] %s1015
          %1021 = dma.vmem_to_hbm [thread:$0]  %s1016, 256, %s1014, %s1000, 128, 128, 8
        $region40: #{tpu_custom_call.1} parent=27 // pred_fallthru
          _
      $region28: #{tpu_custom_call.1} parent=5 // pred_fallthru
        _
      %p1022 = scmp.le.s32.totalorder 2, %s17
      // Predicated region
      $region41: #{tpu_custom_call.1} parent=5 // pred_check
        %p1023 = pneg %p1022
      $region42: #{tpu_custom_call.1} parent=5 // pred_check_branch
        %1025 = sbr.rel (%p1023) target = $region44
      $region43: #{tpu_custom_call.1} parent=5 // pred_region
        %s1026 = ssub.s32 %s17, 2
        // Predicated region
        $region45: #{tpu_custom_call.1} parent=43 // pred_check
          %p1027 = pneg %p116
        $region46: #{tpu_custom_call.1} parent=43 // pred_check_branch
          %1029 = sbr.rel (%p1027) target = $region48
        $region47: #{tpu_custom_call.1} parent=43 // pred_region
          %s1030 = sand.u32 %s101, 1
          %s1031 = scalar_lea.sflag [#allocation4], %s1030
          %s1032 = sand.u32 %s101, 1
          %s1033 = smul.addr %s1032, 16
          %s1034 = scalar_lea.vmem [#allocation7], %s1033
          %1035 = dma.done %s1031, 256
        $region48: #{tpu_custom_call.1} parent=43 // pred_fallthru
          _
      $region44: #{tpu_custom_call.1} parent=5 // pred_fallthru
        _
    $region6: #{tpu_custom_call.1} parent=1 // loop_footer
      %s21 = sadd.s32 1, %s17
    $region7: #{tpu_custom_call.1} parent=1 // loop_footer_branch
      %16 = sbr.rel target = $region3
    $region8: #{tpu_custom_call.1} parent=1 // loop_exit
      _
    %1036 = vsyncpa [#allocation3], 1
    %s1037 = scalar_lea.sflag [#allocation3], 1
    %1038 = vsyncpa %s1037, 1
    %1039 = vsyncpa [#allocation6], 1
    %s1040 = scalar_lea.sflag [#allocation6], 1
    %1041 = vsyncpa %s1040, 1
    %1042 = vsyncpa [#allocation4], 1
    %s1043 = scalar_lea.sflag [#allocation4], 1
    %1044 = vsyncpa %s1043, 1

// kernel: tpu_custom_call.1
$region0: #{tpu_custom_call.1}
  #allocation0 [shape = 'u32[]', space=smem, size = 0x4, offset = 0x4, fixed_abs, tag = 'smem constant byte address 0x4 - core index']
  #allocation1 [shape = 'u32[144,128]{1,0:T(1,128)}', space=vmem, size = 0x12000, scoped, tag = 'internal scratch']
  %s0 = inlined_call_operand.hbm [shape: f32[2,4,16,42], index: 0, kind: input, shape index: {}]
  %s1 = inlined_call_operand.hbm [shape: f32[2,4,16,42], index: 1, kind: input, shape index: {}]
  %s2 = inlined_call_operand.hbm [shape: f32[2,16,32], index: 2, kind: output, shape index: {}]
  %s3 = sld [smem:[#allocation0]]
  $region49: #{tpu_custom_call.1} parent=0
    _
  %s5 = ssub.s32 1, %s3
  %s6 = scalar_select 0, %s5, %s3
  $region1: #{tpu_custom_call.1} parent=0
    #allocation2 [shape = 'u8[65536]{0}', space=vmem, size = 0x10000, scoped, tag = 'input window, operand 0']
    #allocation3 [shape = 's32[2]{0}', space=sflag, size = 0x8, scoped, tag = 'scoped memory for tpu_custom_call.1']
    #allocation4 [shape = 's32[2]{0}', space=sflag, size = 0x8, scoped, tag = 'scoped memory for tpu_custom_call.1']
    #allocation5 [shape = 'u8[65536]{0}', space=vmem, size = 0x10000, scoped, tag = 'input window, operand 1']
    #allocation6 [shape = 's32[2]{0}', space=sflag, size = 0x8, scoped, tag = 'scoped memory for tpu_custom_call.1']
    #allocation7 [shape = 'u8[16384]{0}', space=vmem, size = 0x4000, scoped, tag = 'output window, operand 0']
    %7 = vsyncpa [#allocation3], 0
    %s8 = scalar_lea.sflag [#allocation3], 1
    %9 = vsyncpa %s8, 0
    %10 = vsyncpa [#allocation6], 0
    %s11 = scalar_lea.sflag [#allocation6], 1
    %12 = vsyncpa %s11, 0
    %13 = vsyncpa [#allocation4], 0
    %s14 = scalar_lea.sflag [#allocation4], 1
    %15 = vsyncpa %s14, 0
    loop: start=0, step=1, limit=4
    $region2: #{tpu_custom_call.1} parent=1 // loop_pre_header
      _
    $region3: #{tpu_custom_call.1} parent=1 // loop_header
      %s17 = sphi 0, %s21
      %p18 = scmp.ge.s32.totalorder %s17, 4
      %s24 = sphi 0, %s36
      %s25 = sphi 0, %s32
      %s26 = sphi 0, %s24
      %s27 = sphi 0, %s25
      %s28 = sphi 0, %s26
      %s29 = sphi 0, %s27
      %s41 = sphi 0, %s43
      %s44 = sphi 0, %s41
      %s45 = sphi 0, %s44
      %s61 = sphi 0, %s45
      %s69 = sphi 0, %s71
      %s72 = sphi 0, %s69
      %s73 = sphi 0, %s72
      %s89 = sphi 0, %s73
      %s97 = sphi 0, %s99
      %s100 = sphi 0, %s97
      %s101 = sphi 0, %s100
      %s117 = sphi 0, %s101
    $region4: #{tpu_custom_call.1} parent=1 // loop_header_branch
      %20 = sbr.rel (%p18) target = $region8
    $region5: #{tpu_custom_call.1} parent=1 // loop_body
      %s22 = ssub.s32 %s17, 1
      %s23 = ssub.s32 %s17, 2
      %s30 = sadd.s32 1, %s25
      %p31 = scmp.ge.s32.totalorder %s30, 1
      %s32 = scalar_select %p31, 0, %s30
      %s33 = sadd.s32 1, %s24
      %s34 = scalar_select %p31, %s33, %s24
      %p35 = scmp.ge.s32.totalorder %s34, 2
      %s36 = scalar_select %p35, 0, %s34
      %s37 = ssub.s32 %s24, %s36
      %s38 = ssub.s32 %s25, %s32
      %s39 = sor.u32 %s37, %s38
      %p40 = scmp.eq.s32.totalorder %s39, 0
      %s42 = sadd.s32 %s41, 1
      %s43 = scalar_select %p40, %s41, %s42
      %p46 = pneg %p40
      %p47 = scmp.eq.s32.totalorder %s17, 1
      %p48 = por %p46, %p47
      %p49 = scmp.ne.s32.totalorder %s41, %s44
      %p50 = scmp.eq.s32.totalorder %s17, 0
      %p51 = por %p49, %p50
      %p52 = scmp.ne.s32.totalorder %s41, %s44
      %p53 = scmp.eq.s32.totalorder %s22, 1
      %p54 = por %p52, %p53
      %p55 = scmp.ne.s32.totalorder %s44, %s45
      %p56 = scmp.eq.s32.totalorder %s22, 0
      %p57 = por %p55, %p56
      %p58 = scmp.ne.s32.totalorder %s44, %s45
      %p59 = scmp.eq.s32.totalorder %s23, 1
      %p60 = por %p58, %p59
      %p62 = scmp.ne.s32.totalorder %s45, %s61
      %p63 = scmp.eq.s32.totalorder %s23, 0
      %p64 = por %p62, %p63
      %s65 = ssub.s32 %s24, %s36
      %s66 = ssub.s32 %s25, %s32
      %s67 = sor.u32 %s65, %s66
      %p68 = scmp.eq.s32.totalorder %s67, 0
      %s70 = sadd.s32 %s69, 1
      %s71 = scalar_select %p68, %s69, %s70
      %p74 = pneg %p68
      %p75 = scmp.eq.s32.totalorder %s17, 1
      %p76 = por %p74, %p75
      %p77 = scmp.ne.s32.totalorder %s69, %s72
      %p78 = scmp.eq.s32.totalorder %s17, 0
      %p79 = por %p77, %p78
      %p80 = scmp.ne.s32.totalorder %s69, %s72
      %p81 = scmp.eq.s32.totalorder %s22, 1
      %p82 = por %p80, %p81
      %p83 = scmp.ne.s32.totalorder %s72, %s73
      %p84 = scmp.eq.s32.totalorder %s22, 0
      %p85 = por %p83, %p84
      %p86 = scmp.ne.s32.totalorder %s72, %s73
      %p87 = scmp.eq.s32.totalorder %s23, 1
      %p88 = por %p86, %p87
      %p90 = scmp.ne.s32.totalorder %s73, %s89
      %p91 = scmp.eq.s32.totalorder %s23, 0
      %p92 = por %p90, %p91
      %s93 = ssub.s32 %s24, %s36
      %s94 = ssub.s32 %s25, %s32
      %s95 = sor.u32 %s93, %s94
      %p96 = scmp.eq.s32.totalorder %s95, 0
      %s98 = sadd.s32 %s97, 1
      %s99 = scalar_select %p96, %s97, %s98
      %p102 = pneg %p96
      %p103 = scmp.eq.s32.totalorder %s17, 1
      %p104 = por %p102, %p103
      %p105 = scmp.ne.s32.totalorder %s97, %s100
      %p106 = scmp.eq.s32.totalorder %s17, 0
      %p107 = por %p105, %p106
      %p108 = scmp.ne.s32.totalorder %s97, %s100
      %p109 = scmp.eq.s32.totalorder %s22, 1
      %p110 = por %p108, %p109
      %p111 = scmp.ne.s32.totalorder %s100, %s101
      %p112 = scmp.eq.s32.totalorder %s22, 0
      %p113 = por %p111, %p112
      %p114 = scmp.ne.s32.totalorder %s100, %s101
      %p115 = scmp.eq.s32.totalorder %s23, 1
      %p116 = por %p114, %p115
      %p118 = scmp.ne.s32.totalorder %s101, %s117
      %p119 = scmp.eq.s32.totalorder %s23, 0
      %p120 = por %p118, %p119
      %p121 = scmp.le.s32.totalorder 1, %s17
      %p122 = scmp.lt.s32.totalorder %s17, 3
      %p123 = pnand %p121, %p122
      %p124 = pneg %p123
      // Predicated region
      $region9: #{tpu_custom_call.1} parent=5 // pred_check
        _
      $region10: #{tpu_custom_call.1} parent=5 // pred_check_branch
        %126 = sbr.rel (%p123) target = $region12
      $region11: #{tpu_custom_call.1} parent=5 // pred_region
        %s127 = ssub.s32 %s17, 1
      $region12: #{tpu_custom_call.1} parent=5 // pred_fallthru
        _
      %p128 = scmp.lt.s32.totalorder %s17, 2
      // Predicated region
      $region13: #{tpu_custom_call.1} parent=5 // pred_check
        %p129 = pneg %p128
      $region14: #{tpu_custom_call.1} parent=5 // pred_check_branch
        %131 = sbr.rel (%p129) target = $region16
      $region15: #{tpu_custom_call.1} parent=5 // pred_region
        // Predicated region
        $region17: #{tpu_custom_call.1} parent=15 // pred_check
          %p132 = pneg %p51
        $region18: #{tpu_custom_call.1} parent=15 // pred_check_branch
          %134 = sbr.rel (%p132) target = $region20
        $region19: #{tpu_custom_call.1} parent=15 // pred_region
          %s135 = sand.u32 %s41, 1
          %s136 = scalar_lea.sflag [#allocation3], %s135
          %s137 = sand.u32 %s41, 1
          %s138 = smul.addr %s137, 64
          %s139 = scalar_lea.vmem [#allocation2], %s138
          %s140 = smul.u32 2, %s25
          %s142 = ssub.s32 1024, 1024
          %143 = vsyncadd %s136, %s142
          %s144 = smul.addr %s24, 8
          %s145 = sadd.s32 %s140, %s144
          %s146 = smul.addr %s145, 128
          %s147 = scalar_lea.hbm %s0, %s146
          %s148 = sshll.u32 %s139, 4
          %s149 = int_to_ptr.vmem [resolvable:$true] %s148
          %154 = dma.hbm_to_vmem [thread:$0]  %s147, 1024, %s149, %s136, 128, 128, 8
        $region20: #{tpu_custom_call.1} parent=15 // pred_fallthru
          _
        // Predicated region
        $region21: #{tpu_custom_call.1} parent=15 // pred_check
          %p155 = pneg %p79
        $region22: #{tpu_custom_call.1} parent=15 // pred_check_branch
          %157 = sbr.rel (%p155) target = $region24
        $region23: #{tpu_custom_call.1} parent=15 // pred_region
          %s158 = sand.u32 %s69, 1
          %s159 = scalar_lea.sflag [#allocation6], %s158
          %s160 = sand.u32 %s69, 1
          %s161 = smul.addr %s160, 64
          %s162 = scalar_lea.vmem [#allocation5], %s161
          %s163 = smul.u32 2, %s25
          %s165 = ssub.s32 1024, 1024
          %166 = vsyncadd %s159, %s165
          %s167 = smul.addr %s24, 8
          %s168 = sadd.s32 %s163, %s167
          %s169 = smul.addr %s168, 128
          %s170 = scalar_lea.hbm %s1, %s169
          %s171 = sshll.u32 %s162, 4
          %s172 = int_to_ptr.vmem [resolvable:$true] %s171
          %177 = dma.hbm_to_vmem [thread:$0]  %s170, 1024, %s172, %s159, 128, 128, 8
        $region24: #{tpu_custom_call.1} parent=15 // pred_fallthru
          _
      $region16: #{tpu_custom_call.1} parent=5 // pred_fallthru
        _
      %p178 = scmp.le.s32.totalorder 1, %s17
      %p179 = scmp.lt.s32.totalorder %s17, 3
      %p180 = pnand %p178, %p179
      %p181 = pneg %p180
      // Predicated region
      $region25: #{tpu_custom_call.1} parent=5 // pred_check
        _
      $region26: #{tpu_custom_call.1} parent=5 // pred_check_branch
        %183 = sbr.rel (%p180) target = $region28
      $region27: #{tpu_custom_call.1} parent=5 // pred_region
        %s184 = ssub.s32 %s17, 1
        %s185 = sand.u32 %s44, 1
        %s186 = scalar_lea.sflag [#allocation3], %s185
        %s187 = sand.u32 %s44, 1
        %s188 = smul.addr %s187, 64
        %s189 = scalar_lea.vmem [#allocation2], %s188
        // Predicated region
        $region29: #{tpu_custom_call.1} parent=27 // pred_check
          %p190 = pneg %p57
        $region30: #{tpu_custom_call.1} parent=27 // pred_check_branch
          %192 = sbr.rel (%p190) target = $region32
        $region31: #{tpu_custom_call.1} parent=27 // pred_region
          %193 = dma.done %s186, 1024
        $region32: #{tpu_custom_call.1} parent=27 // pred_fallthru
          _
        %s194 = sand.u32 %s72, 1
        %s195 = scalar_lea.sflag [#allocation6], %s194
        %s196 = sand.u32 %s72, 1
        %s197 = smul.addr %s196, 64
        %s198 = scalar_lea.vmem [#allocation5], %s197
        // Predicated region
        $region33: #{tpu_custom_call.1} parent=27 // pred_check
          %p199 = pneg %p85
        $region34: #{tpu_custom_call.1} parent=27 // pred_check_branch
          %201 = sbr.rel (%p199) target = $region36
        $region35: #{tpu_custom_call.1} parent=27 // pred_region
          %202 = dma.done %s195, 1024
        $region36: #{tpu_custom_call.1} parent=27 // pred_fallthru
          _
        %s203 = sand.u32 %s44, 1
        %s204 = scalar_lea.sflag [#allocation3], %s203
        %s205 = sand.u32 %s44, 1
        %s206 = smul.addr %s205, 64
        %s207 = scalar_lea.vmem [#allocation2], %s206
        %p208 = pneg %p57
        %p209 = pneg %p54
        %s210 = sand.u32 %s72, 1
        %s211 = scalar_lea.sflag [#allocation6], %s210
        %s212 = sand.u32 %s72, 1
        %s213 = smul.addr %s212, 64
        %s214 = scalar_lea.vmem [#allocation5], %s213
        %p215 = pneg %p85
        %p216 = pneg %p82
        %p217 = pneg %p113
        %p218 = pneg %p110
        %s219 = sand.u32 %s100, 1
        %s220 = scalar_lea.sflag [#allocation4], %s219
        %s221 = sand.u32 %s100, 1
        %s222 = smul.addr %s221, 16
        %s223 = scalar_lea.vmem [#allocation7], %s222
        %s224 = smul.u32 2, %s27
        %s225 = smul.u32 2, %s27
        %s226 = smul.u32 2, %s27
        %v227 = vld [vmem:[%s189] sm:$0xff]
        %v228 = vld [vmem:[%s189 + $0x8] sm:$0xff]
        %v229 = vld [vmem:[%s189 + $0x10] sm:$0xff]
        %v230 = vld [vmem:[%s189 + $0x18] sm:$0xff]
        %v231 = vld [vmem:[%s189 + $0x20] sm:$0xff]
        %v232 = vld [vmem:[%s189 + $0x28] sm:$0xff]
        %v233 = vld [vmem:[%s189 + $0x30] sm:$0xff]
        %v234 = vld [vmem:[%s189 + $0x38] sm:$0xff]
        %v235 = vld [vmem:[%s198] sm:$0xff]
        %v236 = vld [vmem:[%s198 + $0x8] sm:$0xff]
        %v237 = vld [vmem:[%s198 + $0x10] sm:$0xff]
        %v238 = vld [vmem:[%s198 + $0x18] sm:$0xff]
        %v239 = vld [vmem:[%s198 + $0x20] sm:$0xff]
        %v240 = vld [vmem:[%s198 + $0x28] sm:$0xff]
        %v241 = vld [vmem:[%s198 + $0x30] sm:$0xff]
        %v242 = vld [vmem:[%s198 + $0x38] sm:$0xff]
        %251 = vrot.lane.b32.xlu0 %v227, 127
        %v252 = vpop.permute.xlu0 %251
        %253 = vrot.lane.b32.xlu0 %v228, 127
        %v254 = vpop.permute.xlu0 %253
        %255 = vrot.lane.b32.xlu0 %v229, 127
        %v256 = vpop.permute.xlu0 %255
        %257 = vrot.lane.b32.xlu0 %v230, 127
        %v258 = vpop.permute.xlu0 %257
        %259 = vrot.lane.b32.xlu0 %v231, 127
        %v260 = vpop.permute.xlu0 %259
        %261 = vrot.lane.b32.xlu0 %v232, 127
        %v262 = vpop.permute.xlu0 %261
        %263 = vrot.lane.b32.xlu0 %v233, 127
        %v264 = vpop.permute.xlu0 %263
        %265 = vrot.lane.b32.xlu0 %v234, 127
        %v266 = vpop.permute.xlu0 %265
        %v275 = vadd.f32 %v227, %v252
        %v276 = vadd.f32 %v228, %v254
        %v277 = vadd.f32 %v229, %v256
        %v278 = vadd.f32 %v230, %v258
        %v279 = vadd.f32 %v231, %v260
        %v280 = vadd.f32 %v232, %v262
        %v281 = vadd.f32 %v233, %v264
        %v282 = vadd.f32 %v234, %v266
        %v283 = vadd.f32 %v235, 0.0
        %v284 = vadd.f32 %v236, 0.0
        %v285 = vadd.f32 %v237, 0.0
        %v286 = vadd.f32 %v238, 0.0
        %v287 = vadd.f32 %v239, 0.0
        %v288 = vadd.f32 %v240, 0.0
        %v289 = vadd.f32 %v241, 0.0
        %v290 = vadd.f32 %v242, 0.0
        %291 = vrot.lane.b32.xlu0 %v227, 126
        %v292 = vpop.permute.xlu0 %291
        %293 = vrot.lane.b32.xlu0 %v228, 126
        %v294 = vpop.permute.xlu0 %293
        %295 = vrot.lane.b32.xlu0 %v229, 126
        %v296 = vpop.permute.xlu0 %295
        %297 = vrot.lane.b32.xlu0 %v230, 126
        %v298 = vpop.permute.xlu0 %297
        %299 = vrot.lane.b32.xlu0 %v231, 126
        %v300 = vpop.permute.xlu0 %299
        %301 = vrot.lane.b32.xlu0 %v232, 126
        %v302 = vpop.permute.xlu0 %301
        %303 = vrot.lane.b32.xlu0 %v233, 126
        %v304 = vpop.permute.xlu0 %303
        %305 = vrot.lane.b32.xlu0 %v234, 126
        %v306 = vpop.permute.xlu0 %305
        %v315 = vadd.f32 %v275, %v292
        %v316 = vadd.f32 %v276, %v294
        %v317 = vadd.f32 %v277, %v296
        %v318 = vadd.f32 %v278, %v298
        %v319 = vadd.f32 %v279, %v300
        %v320 = vadd.f32 %v280, %v302
        %v321 = vadd.f32 %v281, %v304
        %v322 = vadd.f32 %v282, %v306
        %331 = vrot.lane.b32.xlu0 %v235, 1
        %v332 = vpop.permute.xlu0 %331
        %333 = vrot.lane.b32.xlu0 %v236, 1
        %v334 = vpop.permute.xlu0 %333
        %335 = vrot.lane.b32.xlu0 %v237, 1
        %v336 = vpop.permute.xlu0 %335
        %337 = vrot.lane.b32.xlu0 %v238, 1
        %v338 = vpop.permute.xlu0 %337
        %339 = vrot.lane.b32.xlu0 %v239, 1
        %v340 = vpop.permute.xlu0 %339
        %341 = vrot.lane.b32.xlu0 %v240, 1
        %v342 = vpop.permute.xlu0 %341
        %343 = vrot.lane.b32.xlu0 %v241, 1
        %v344 = vpop.permute.xlu0 %343
        %345 = vrot.lane.b32.xlu0 %v242, 1
        %v346 = vpop.permute.xlu0 %345
        %v355 = vadd.f32 %v283, %v332
        %v356 = vadd.f32 %v284, %v334
        %v357 = vadd.f32 %v285, %v336
        %v358 = vadd.f32 %v286, %v338
        %v359 = vadd.f32 %v287, %v340
        %v360 = vadd.f32 %v288, %v342
        %v361 = vadd.f32 %v289, %v344
        %v362 = vadd.f32 %v290, %v346
        %363 = vrot.lane.b32.xlu0 %v227, 125
        %v364 = vpop.permute.xlu0 %363
        %365 = vrot.lane.b32.xlu0 %v228, 125
        %v366 = vpop.permute.xlu0 %365
        %367 = vrot.lane.b32.xlu0 %v229, 125
        %v368 = vpop.permute.xlu0 %367
        %369 = vrot.lane.b32.xlu0 %v230, 125
        %v370 = vpop.permute.xlu0 %369
        %371 = vrot.lane.b32.xlu0 %v231, 125
        %v372 = vpop.permute.xlu0 %371
        %373 = vrot.lane.b32.xlu0 %v232, 125
        %v374 = vpop.permute.xlu0 %373
        %375 = vrot.lane.b32.xlu0 %v233, 125
        %v376 = vpop.permute.xlu0 %375
        %377 = vrot.lane.b32.xlu0 %v234, 125
        %v378 = vpop.permute.xlu0 %377
        %v387 = vadd.f32 %v315, %v364
        %v388 = vadd.f32 %v316, %v366
        %v389 = vadd.f32 %v317, %v368
        %v390 = vadd.f32 %v318, %v370
        %v391 = vadd.f32 %v319, %v372
        %v392 = vadd.f32 %v320, %v374
        %v393 = vadd.f32 %v321, %v376
        %v394 = vadd.f32 %v322, %v378
        %395 = vrot.lane.b32.xlu0 %v235, 2
        %v396 = vpop.permute.xlu0 %395
        %397 = vrot.lane.b32.xlu0 %v236, 2
        %v398 = vpop.permute.xlu0 %397
        %399 = vrot.lane.b32.xlu0 %v237, 2
        %v400 = vpop.permute.xlu0 %399
        %401 = vrot.lane.b32.xlu0 %v238, 2
        %v402 = vpop.permute.xlu0 %401
        %403 = vrot.lane.b32.xlu0 %v239, 2
        %v404 = vpop.permute.xlu0 %403
        %405 = vrot.lane.b32.xlu0 %v240, 2
        %v406 = vpop.permute.xlu0 %405
        %407 = vrot.lane.b32.xlu0 %v241, 2
        %v408 = vpop.permute.xlu0 %407
        %409 = vrot.lane.b32.xlu0 %v242, 2
        %v410 = vpop.permute.xlu0 %409
        %v419 = vadd.f32 %v355, %v396
        %v420 = vadd.f32 %v356, %v398
        %v421 = vadd.f32 %v357, %v400
        %v422 = vadd.f32 %v358, %v402
        %v423 = vadd.f32 %v359, %v404
        %v424 = vadd.f32 %v360, %v406
        %v425 = vadd.f32 %v361, %v408
        %v426 = vadd.f32 %v362, %v410
        %427 = vrot.lane.b32.xlu0 %v227, 124
        %v428 = vpop.permute.xlu0 %427
        %429 = vrot.lane.b32.xlu0 %v228, 124
        %v430 = vpop.permute.xlu0 %429
        %431 = vrot.lane.b32.xlu0 %v229, 124
        %v432 = vpop.permute.xlu0 %431
        %433 = vrot.lane.b32.xlu0 %v230, 124
        %v434 = vpop.permute.xlu0 %433
        %435 = vrot.lane.b32.xlu0 %v231, 124
        %v436 = vpop.permute.xlu0 %435
        %437 = vrot.lane.b32.xlu0 %v232, 124
        %v438 = vpop.permute.xlu0 %437
        %439 = vrot.lane.b32.xlu0 %v233, 124
        %v440 = vpop.permute.xlu0 %439
        %441 = vrot.lane.b32.xlu0 %v234, 124
        %v442 = vpop.permute.xlu0 %441
        %v451 = vadd.f32 %v387, %v428
        %v452 = vadd.f32 %v388, %v430
        %v453 = vadd.f32 %v389, %v432
        %v454 = vadd.f32 %v390, %v434
        %v455 = vadd.f32 %v391, %v436
        %v456 = vadd.f32 %v392, %v438
        %v457 = vadd.f32 %v393, %v440
        %v458 = vadd.f32 %v394, %v442
        %459 = vrot.lane.b32.xlu0 %v235, 3
        %v460 = vpop.permute.xlu0 %459
        %461 = vrot.lane.b32.xlu0 %v236, 3
        %v462 = vpop.permute.xlu0 %461
        %463 = vrot.lane.b32.xlu0 %v237, 3
        %v464 = vpop.permute.xlu0 %463
        %465 = vrot.lane.b32.xlu0 %v238, 3
        %v466 = vpop.permute.xlu0 %465
        %467 = vrot.lane.b32.xlu0 %v239, 3
        %v468 = vpop.permute.xlu0 %467
        %469 = vrot.lane.b32.xlu0 %v240, 3
        %v470 = vpop.permute.xlu0 %469
        %471 = vrot.lane.b32.xlu0 %v241, 3
        %v472 = vpop.permute.xlu0 %471
        %473 = vrot.lane.b32.xlu0 %v242, 3
        %v474 = vpop.permute.xlu0 %473
        %v483 = vadd.f32 %v419, %v460
        %v484 = vadd.f32 %v420, %v462
        %v485 = vadd.f32 %v421, %v464
        %v486 = vadd.f32 %v422, %v466
        %v487 = vadd.f32 %v423, %v468
        %v488 = vadd.f32 %v424, %v470
        %v489 = vadd.f32 %v425, %v472
        %v490 = vadd.f32 %v426, %v474
        %491 = vrot.lane.b32.xlu0 %v227, 123
        %v492 = vpop.permute.xlu0 %491
        %493 = vrot.lane.b32.xlu0 %v228, 123
        %v494 = vpop.permute.xlu0 %493
        %495 = vrot.lane.b32.xlu0 %v229, 123
        %v496 = vpop.permute.xlu0 %495
        %497 = vrot.lane.b32.xlu0 %v230, 123
        %v498 = vpop.permute.xlu0 %497
        %499 = vrot.lane.b32.xlu0 %v231, 123
        %v500 = vpop.permute.xlu0 %499
        %501 = vrot.lane.b32.xlu0 %v232, 123
        %v502 = vpop.permute.xlu0 %501
        %503 = vrot.lane.b32.xlu0 %v233, 123
        %v504 = vpop.permute.xlu0 %503
        %505 = vrot.lane.b32.xlu0 %v234, 123
        %v506 = vpop.permute.xlu0 %505
        %v515 = vadd.f32 %v451, %v492
        %v516 = vadd.f32 %v452, %v494
        %v517 = vadd.f32 %v453, %v496
        %v518 = vadd.f32 %v454, %v498
        %v519 = vadd.f32 %v455, %v500
        %v520 = vadd.f32 %v456, %v502
        %v521 = vadd.f32 %v457, %v504
        %v522 = vadd.f32 %v458, %v506
        %523 = vrot.lane.b32.xlu0 %v235, 4
        %v524 = vpop.permute.xlu0 %523
        %525 = vrot.lane.b32.xlu0 %v236, 4
        %v526 = vpop.permute.xlu0 %525
        %527 = vrot.lane.b32.xlu0 %v237, 4
        %v528 = vpop.permute.xlu0 %527
        %529 = vrot.lane.b32.xlu0 %v238, 4
        %v530 = vpop.permute.xlu0 %529
        %531 = vrot.lane.b32.xlu0 %v239, 4
        %v532 = vpop.permute.xlu0 %531
        %533 = vrot.lane.b32.xlu0 %v240, 4
        %v534 = vpop.permute.xlu0 %533
        %535 = vrot.lane.b32.xlu0 %v241, 4
        %v536 = vpop.permute.xlu0 %535
        %537 = vrot.lane.b32.xlu0 %v242, 4
        %v538 = vpop.permute.xlu0 %537
        %v547 = vadd.f32 %v483, %v524
        %v548 = vadd.f32 %v484, %v526
        %v549 = vadd.f32 %v485, %v528
        %v550 = vadd.f32 %v486, %v530
        %v551 = vadd.f32 %v487, %v532
        %v552 = vadd.f32 %v488, %v534
        %v553 = vadd.f32 %v489, %v536
        %v554 = vadd.f32 %v490, %v538
        %555 = vrot.lane.b32.xlu0 %v227, 122
        %v556 = vpop.permute.xlu0 %555
        %557 = vrot.lane.b32.xlu0 %v228, 122
        %v558 = vpop.permute.xlu0 %557
        %559 = vrot.lane.b32.xlu0 %v229, 122
        %v560 = vpop.permute.xlu0 %559
        %561 = vrot.lane.b32.xlu0 %v230, 122
        %v562 = vpop.permute.xlu0 %561
        %563 = vrot.lane.b32.xlu0 %v231, 122
        %v564 = vpop.permute.xlu0 %563
        %565 = vrot.lane.b32.xlu0 %v232, 122
        %v566 = vpop.permute.xlu0 %565
        %567 = vrot.lane.b32.xlu0 %v233, 122
        %v568 = vpop.permute.xlu0 %567
        %569 = vrot.lane.b32.xlu0 %v234, 122
        %v570 = vpop.permute.xlu0 %569
        %v579 = vadd.f32 %v515, %v556
        %v580 = vadd.f32 %v516, %v558
        %v581 = vadd.f32 %v517, %v560
        %v582 = vadd.f32 %v518, %v562
        %v583 = vadd.f32 %v519, %v564
        %v584 = vadd.f32 %v520, %v566
        %v585 = vadd.f32 %v521, %v568
        %v586 = vadd.f32 %v522, %v570
        %587 = vrot.lane.b32.xlu0 %v235, 5
        %v588 = vpop.permute.xlu0 %587
        %589 = vrot.lane.b32.xlu0 %v236, 5
        %v590 = vpop.permute.xlu0 %589
        %591 = vrot.lane.b32.xlu0 %v237, 5
        %v592 = vpop.permute.xlu0 %591
        %593 = vrot.lane.b32.xlu0 %v238, 5
        %v594 = vpop.permute.xlu0 %593
        %595 = vrot.lane.b32.xlu0 %v239, 5
        %v596 = vpop.permute.xlu0 %595
        %597 = vrot.lane.b32.xlu0 %v240, 5
        %v598 = vpop.permute.xlu0 %597
        %599 = vrot.lane.b32.xlu0 %v241, 5
        %v600 = vpop.permute.xlu0 %599
        %601 = vrot.lane.b32.xlu0 %v242, 5
        %v602 = vpop.permute.xlu0 %601
        %v611 = vadd.f32 %v547, %v588
        %v612 = vadd.f32 %v548, %v590
        %v613 = vadd.f32 %v549, %v592
        %v614 = vadd.f32 %v550, %v594
        %v615 = vadd.f32 %v551, %v596
        %v616 = vadd.f32 %v552, %v598
        %v617 = vadd.f32 %v553, %v600
        %v618 = vadd.f32 %v554, %v602
        %619 = vrot.lane.b32.xlu0 %v227, 121
        %v620 = vpop.permute.xlu0 %619
        %621 = vrot.lane.b32.xlu0 %v228, 121
        %v622 = vpop.permute.xlu0 %621
        %623 = vrot.lane.b32.xlu0 %v229, 121
        %v624 = vpop.permute.xlu0 %623
        %625 = vrot.lane.b32.xlu0 %v230, 121
        %v626 = vpop.permute.xlu0 %625
        %627 = vrot.lane.b32.xlu0 %v231, 121
        %v628 = vpop.permute.xlu0 %627
        %629 = vrot.lane.b32.xlu0 %v232, 121
        %v630 = vpop.permute.xlu0 %629
        %631 = vrot.lane.b32.xlu0 %v233, 121
        %v632 = vpop.permute.xlu0 %631
        %633 = vrot.lane.b32.xlu0 %v234, 121
        %v634 = vpop.permute.xlu0 %633
        %v643 = vadd.f32 %v579, %v620
        %v644 = vadd.f32 %v580, %v622
        %v645 = vadd.f32 %v581, %v624
        %v646 = vadd.f32 %v582, %v626
        %v647 = vadd.f32 %v583, %v628
        %v648 = vadd.f32 %v584, %v630
        %v649 = vadd.f32 %v585, %v632
        %v650 = vadd.f32 %v586, %v634
        %651 = vrot.lane.b32.xlu0 %v235, 6
        %v652 = vpop.permute.xlu0 %651
        %653 = vrot.lane.b32.xlu0 %v236, 6
        %v654 = vpop.permute.xlu0 %653
        %655 = vrot.lane.b32.xlu0 %v237, 6
        %v656 = vpop.permute.xlu0 %655
        %657 = vrot.lane.b32.xlu0 %v238, 6
        %v658 = vpop.permute.xlu0 %657
        %659 = vrot.lane.b32.xlu0 %v239, 6
        %v660 = vpop.permute.xlu0 %659
        %661 = vrot.lane.b32.xlu0 %v240, 6
        %v662 = vpop.permute.xlu0 %661
        %663 = vrot.lane.b32.xlu0 %v241, 6
        %v664 = vpop.permute.xlu0 %663
        %665 = vrot.lane.b32.xlu0 %v242, 6
        %v666 = vpop.permute.xlu0 %665
        %v675 = vadd.f32 %v611, %v652
        %v676 = vadd.f32 %v612, %v654
        %v677 = vadd.f32 %v613, %v656
        %v678 = vadd.f32 %v614, %v658
        %v679 = vadd.f32 %v615, %v660
        %v680 = vadd.f32 %v616, %v662
        %v681 = vadd.f32 %v617, %v664
        %v682 = vadd.f32 %v618, %v666
        %683 = vrot.lane.b32.xlu0 %v227, 120
        %v684 = vpop.permute.xlu0 %683
        %685 = vrot.lane.b32.xlu0 %v228, 120
        %v686 = vpop.permute.xlu0 %685
        %687 = vrot.lane.b32.xlu0 %v229, 120
        %v688 = vpop.permute.xlu0 %687
        %689 = vrot.lane.b32.xlu0 %v230, 120
        %v690 = vpop.permute.xlu0 %689
        %691 = vrot.lane.b32.xlu0 %v231, 120
        %v692 = vpop.permute.xlu0 %691
        %693 = vrot.lane.b32.xlu0 %v232, 120
        %v694 = vpop.permute.xlu0 %693
        %695 = vrot.lane.b32.xlu0 %v233, 120
        %v696 = vpop.permute.xlu0 %695
        %697 = vrot.lane.b32.xlu0 %v234, 120
        %v698 = vpop.permute.xlu0 %697
        %v707 = vadd.f32 %v643, %v684
        %v708 = vadd.f32 %v644, %v686
        %v709 = vadd.f32 %v645, %v688
        %v710 = vadd.f32 %v646, %v690
        %v711 = vadd.f32 %v647, %v692
        %v712 = vadd.f32 %v648, %v694
        %v713 = vadd.f32 %v649, %v696
        %v714 = vadd.f32 %v650, %v698
        %715 = vrot.lane.b32.xlu0 %v235, 7
        %v716 = vpop.permute.xlu0 %715
        %717 = vrot.lane.b32.xlu0 %v236, 7
        %v718 = vpop.permute.xlu0 %717
        %719 = vrot.lane.b32.xlu0 %v237, 7
        %v720 = vpop.permute.xlu0 %719
        %721 = vrot.lane.b32.xlu0 %v238, 7
        %v722 = vpop.permute.xlu0 %721
        %723 = vrot.lane.b32.xlu0 %v239, 7
        %v724 = vpop.permute.xlu0 %723
        %725 = vrot.lane.b32.xlu0 %v240, 7
        %v726 = vpop.permute.xlu0 %725
        %727 = vrot.lane.b32.xlu0 %v241, 7
        %v728 = vpop.permute.xlu0 %727
        %729 = vrot.lane.b32.xlu0 %v242, 7
        %v730 = vpop.permute.xlu0 %729
        %v739 = vadd.f32 %v675, %v716
        %v740 = vadd.f32 %v676, %v718
        %v741 = vadd.f32 %v677, %v720
        %v742 = vadd.f32 %v678, %v722
        %v743 = vadd.f32 %v679, %v724
        %v744 = vadd.f32 %v680, %v726
        %v745 = vadd.f32 %v681, %v728
        %v746 = vadd.f32 %v682, %v730
        %747 = vrot.lane.b32.xlu0 %v227, 119
        %v748 = vpop.permute.xlu0 %747
        %749 = vrot.lane.b32.xlu0 %v228, 119
        %v750 = vpop.permute.xlu0 %749
        %751 = vrot.lane.b32.xlu0 %v229, 119
        %v752 = vpop.permute.xlu0 %751
        %753 = vrot.lane.b32.xlu0 %v230, 119
        %v754 = vpop.permute.xlu0 %753
        %755 = vrot.lane.b32.xlu0 %v231, 119
        %v756 = vpop.permute.xlu0 %755
        %757 = vrot.lane.b32.xlu0 %v232, 119
        %v758 = vpop.permute.xlu0 %757
        %759 = vrot.lane.b32.xlu0 %v233, 119
        %v760 = vpop.permute.xlu0 %759
        %761 = vrot.lane.b32.xlu0 %v234, 119
        %v762 = vpop.permute.xlu0 %761
        %v771 = vadd.f32 %v707, %v748
        %v772 = vadd.f32 %v708, %v750
        %v773 = vadd.f32 %v709, %v752
        %v774 = vadd.f32 %v710, %v754
        %v775 = vadd.f32 %v711, %v756
        %v776 = vadd.f32 %v712, %v758
        %v777 = vadd.f32 %v713, %v760
        %v778 = vadd.f32 %v714, %v762
        %779 = vrot.lane.b32.xlu0 %v235, 8
        %v780 = vpop.permute.xlu0 %779
        %781 = vrot.lane.b32.xlu0 %v236, 8
        %v782 = vpop.permute.xlu0 %781
        %783 = vrot.lane.b32.xlu0 %v237, 8
        %v784 = vpop.permute.xlu0 %783
        %785 = vrot.lane.b32.xlu0 %v238, 8
        %v786 = vpop.permute.xlu0 %785
        %787 = vrot.lane.b32.xlu0 %v239, 8
        %v788 = vpop.permute.xlu0 %787
        %789 = vrot.lane.b32.xlu0 %v240, 8
        %v790 = vpop.permute.xlu0 %789
        %791 = vrot.lane.b32.xlu0 %v241, 8
        %v792 = vpop.permute.xlu0 %791
        %793 = vrot.lane.b32.xlu0 %v242, 8
        %v794 = vpop.permute.xlu0 %793
        %v803 = vadd.f32 %v739, %v780
        %v804 = vadd.f32 %v740, %v782
        %v805 = vadd.f32 %v741, %v784
        %v806 = vadd.f32 %v742, %v786
        %v807 = vadd.f32 %v743, %v788
        %v808 = vadd.f32 %v744, %v790
        %v809 = vadd.f32 %v745, %v792
        %v810 = vadd.f32 %v746, %v794
        %811 = vrot.lane.b32.xlu0 %v227, 118
        %v812 = vpop.permute.xlu0 %811
        %813 = vrot.lane.b32.xlu0 %v228, 118
        %v814 = vpop.permute.xlu0 %813
        %815 = vrot.lane.b32.xlu0 %v229, 118
        %v816 = vpop.permute.xlu0 %815
        %817 = vrot.lane.b32.xlu0 %v230, 118
        %v818 = vpop.permute.xlu0 %817
        %819 = vrot.lane.b32.xlu0 %v231, 118
        %v820 = vpop.permute.xlu0 %819
        %821 = vrot.lane.b32.xlu0 %v232, 118
        %v822 = vpop.permute.xlu0 %821
        %823 = vrot.lane.b32.xlu0 %v233, 118
        %v824 = vpop.permute.xlu0 %823
        %825 = vrot.lane.b32.xlu0 %v234, 118
        %v826 = vpop.permute.xlu0 %825
        %v835 = vadd.f32 %v771, %v812
        %v836 = vadd.f32 %v772, %v814
        %v837 = vadd.f32 %v773, %v816
        %v838 = vadd.f32 %v774, %v818
        %v839 = vadd.f32 %v775, %v820
        %v840 = vadd.f32 %v776, %v822
        %v841 = vadd.f32 %v777, %v824
        %v842 = vadd.f32 %v778, %v826
        %843 = vrot.lane.b32.xlu0 %v235, 9
        %v844 = vpop.permute.xlu0 %843
        %845 = vrot.lane.b32.xlu0 %v236, 9
        %v846 = vpop.permute.xlu0 %845
        %847 = vrot.lane.b32.xlu0 %v237, 9
        %v848 = vpop.permute.xlu0 %847
        %849 = vrot.lane.b32.xlu0 %v238, 9
        %v850 = vpop.permute.xlu0 %849
        %851 = vrot.lane.b32.xlu0 %v239, 9
        %v852 = vpop.permute.xlu0 %851
        %853 = vrot.lane.b32.xlu0 %v240, 9
        %v854 = vpop.permute.xlu0 %853
        %855 = vrot.lane.b32.xlu0 %v241, 9
        %v856 = vpop.permute.xlu0 %855
        %857 = vrot.lane.b32.xlu0 %v242, 9
        %v858 = vpop.permute.xlu0 %857
        %v867 = vadd.f32 %v803, %v844
        %v868 = vadd.f32 %v804, %v846
        %v869 = vadd.f32 %v805, %v848
        %v870 = vadd.f32 %v806, %v850
        %v871 = vadd.f32 %v807, %v852
        %v872 = vadd.f32 %v808, %v854
        %v873 = vadd.f32 %v809, %v856
        %v874 = vadd.f32 %v810, %v858
        %883 = vrot.lane.b32.xlu0 %v867, 119
        %v884 = vpop.permute.xlu0 %883
        %885 = vrot.lane.b32.xlu0 %v868, 119
        %v886 = vpop.permute.xlu0 %885
        %887 = vrot.lane.b32.xlu0 %v869, 119
        %v888 = vpop.permute.xlu0 %887
        %889 = vrot.lane.b32.xlu0 %v870, 119
        %v890 = vpop.permute.xlu0 %889
        %891 = vrot.lane.b32.xlu0 %v871, 119
        %v892 = vpop.permute.xlu0 %891
        %893 = vrot.lane.b32.xlu0 %v872, 119
        %v894 = vpop.permute.xlu0 %893
        %895 = vrot.lane.b32.xlu0 %v873, 119
        %v896 = vpop.permute.xlu0 %895
        %897 = vrot.lane.b32.xlu0 %v874, 119
        %v898 = vpop.permute.xlu0 %897
        %v907 = vmul.f32 %v227, %v884
        %v908 = vmul.f32 %v228, %v886
        %v909 = vmul.f32 %v229, %v888
        %v910 = vmul.f32 %v230, %v890
        %v911 = vmul.f32 %v231, %v892
        %v912 = vmul.f32 %v232, %v894
        %v913 = vmul.f32 %v233, %v896
        %v914 = vmul.f32 %v234, %v898
        %923 = vrot.lane.b32.xlu0 %v835, 10
        %v924 = vpop.permute.xlu0 %923
        %925 = vrot.lane.b32.xlu0 %v836, 10
        %v926 = vpop.permute.xlu0 %925
        %927 = vrot.lane.b32.xlu0 %v837, 10
        %v928 = vpop.permute.xlu0 %927
        %929 = vrot.lane.b32.xlu0 %v838, 10
        %v930 = vpop.permute.xlu0 %929
        %931 = vrot.lane.b32.xlu0 %v839, 10
        %v932 = vpop.permute.xlu0 %931
        %933 = vrot.lane.b32.xlu0 %v840, 10
        %v934 = vpop.permute.xlu0 %933
        %935 = vrot.lane.b32.xlu0 %v841, 10
        %v936 = vpop.permute.xlu0 %935
        %937 = vrot.lane.b32.xlu0 %v842, 10
        %v938 = vpop.permute.xlu0 %937
        %v947 = vmul.f32 %v235, %v924
        %v948 = vmul.f32 %v236, %v926
        %v949 = vmul.f32 %v237, %v928
        %v950 = vmul.f32 %v238, %v930
        %v951 = vmul.f32 %v239, %v932
        %v952 = vmul.f32 %v240, %v934
        %v953 = vmul.f32 %v241, %v936
        %v954 = vmul.f32 %v242, %v938
        %963 = vrot.lane.b32.xlu0 %v947, 118
        %v964 = vpop.permute.xlu0 %963
        %965 = vrot.lane.b32.xlu0 %v948, 118
        %v966 = vpop.permute.xlu0 %965
        %967 = vrot.lane.b32.xlu0 %v949, 118
        %v968 = vpop.permute.xlu0 %967
        %969 = vrot.lane.b32.xlu0 %v950, 118
        %v970 = vpop.permute.xlu0 %969
        %971 = vrot.lane.b32.xlu0 %v951, 118
        %v972 = vpop.permute.xlu0 %971
        %973 = vrot.lane.b32.xlu0 %v952, 118
        %v974 = vpop.permute.xlu0 %973
        %975 = vrot.lane.b32.xlu0 %v953, 118
        %v976 = vpop.permute.xlu0 %975
        %977 = vrot.lane.b32.xlu0 %v954, 118
        %v978 = vpop.permute.xlu0 %977
        %v987 = vadd.f32 %v907, %v964
        %v988 = vadd.f32 %v908, %v966
        %v989 = vadd.f32 %v909, %v968
        %v990 = vadd.f32 %v910, %v970
        %v991 = vadd.f32 %v911, %v972
        %v992 = vadd.f32 %v912, %v974
        %v993 = vadd.f32 %v913, %v976
        %v994 = vadd.f32 %v914, %v978
        %vm995 = vcmask 261120
        %v996 = vsel %vm995, %v987, 0.0
        %v997 = vsel %vm995, %v989, 0.0
        %v998 = vadd.f32 %v996, %v997
        %v999 = vsel %vm995, %v991, 0.0
        %v1000 = vadd.f32 %v998, %v999
        %v1001 = vsel %vm995, %v993, 0.0
        %v1002 = vadd.f32 %v1000, %v1001
        %v1003 = vsel %vm995, %v988, 0.0
        %v1004 = vsel %vm995, %v990, 0.0
        %v1005 = vadd.f32 %v1003, %v1004
        %v1006 = vsel %vm995, %v992, 0.0
        %v1007 = vadd.f32 %v1005, %v1006
        %v1008 = vsel %vm995, %v994, 0.0
        %v1009 = vadd.f32 %v1007, %v1008
        %v1010 = vmul.f32 %v1002, 0.011904762
        %v1011 = vmul.f32 %v1009, 0.011904762
        %1012 = vst.msk [vmem:[%s223] sm:$0xff] %vm995, %v1010
        %1013 = vst.msk [vmem:[%s223 + $0x8] sm:$0xff] %vm995, %v1011
        %s1014 = sand.u32 %s100, 1
        %s1015 = scalar_lea.sflag [#allocation4], %s1014
        %s1016 = sand.u32 %s100, 1
        %s1017 = smul.addr %s1016, 16
        %s1018 = scalar_lea.vmem [#allocation7], %s1017
        // Predicated region
        $region37: #{tpu_custom_call.1} parent=27 // pred_check
          %p1019 = pneg %p110
        $region38: #{tpu_custom_call.1} parent=27 // pred_check_branch
          %1021 = sbr.rel (%p1019) target = $region40
        $region39: #{tpu_custom_call.1} parent=27 // pred_region
          %s1022 = smul.u32 2, %s27
          %s1024 = ssub.s32 256, 256
          %1025 = vsyncadd %s1015, %s1024
          %s1026 = smul.addr %s26, 2
          %s1027 = sadd.s32 %s1022, %s1026
          %s1028 = smul.addr %s1027, 128
          %s1029 = scalar_lea.hbm %s2, %s1028
          %s1030 = sshll.u32 %s1018, 4
          %s1031 = int_to_ptr.vmem [resolvable:$true] %s1030
          %1036 = dma.vmem_to_hbm [thread:$0]  %s1031, 256, %s1029, %s1015, 128, 128, 8
        $region40: #{tpu_custom_call.1} parent=27 // pred_fallthru
          _
      $region28: #{tpu_custom_call.1} parent=5 // pred_fallthru
        _
      %p1037 = scmp.le.s32.totalorder 2, %s17
      // Predicated region
      $region41: #{tpu_custom_call.1} parent=5 // pred_check
        %p1038 = pneg %p1037
      $region42: #{tpu_custom_call.1} parent=5 // pred_check_branch
        %1040 = sbr.rel (%p1038) target = $region44
      $region43: #{tpu_custom_call.1} parent=5 // pred_region
        %s1041 = ssub.s32 %s17, 2
        // Predicated region
        $region45: #{tpu_custom_call.1} parent=43 // pred_check
          %p1042 = pneg %p116
        $region46: #{tpu_custom_call.1} parent=43 // pred_check_branch
          %1044 = sbr.rel (%p1042) target = $region48
        $region47: #{tpu_custom_call.1} parent=43 // pred_region
          %s1045 = sand.u32 %s101, 1
          %s1046 = scalar_lea.sflag [#allocation4], %s1045
          %s1047 = sand.u32 %s101, 1
          %s1048 = smul.addr %s1047, 16
          %s1049 = scalar_lea.vmem [#allocation7], %s1048
          %1050 = dma.done %s1046, 256
        $region48: #{tpu_custom_call.1} parent=43 // pred_fallthru
          _
      $region44: #{tpu_custom_call.1} parent=5 // pred_fallthru
        _
    $region6: #{tpu_custom_call.1} parent=1 // loop_footer
      %s21 = sadd.s32 1, %s17
    $region7: #{tpu_custom_call.1} parent=1 // loop_footer_branch
      %16 = sbr.rel target = $region3
    $region8: #{tpu_custom_call.1} parent=1 // loop_exit
      _
    %1051 = vsyncpa [#allocation3], 1
    %s1052 = scalar_lea.sflag [#allocation3], 1
    %1053 = vsyncpa %s1052, 1
    %1054 = vsyncpa [#allocation6], 1
    %s1055 = scalar_lea.sflag [#allocation6], 1
    %1056 = vsyncpa %s1055, 1
    %1057 = vsyncpa [#allocation4], 1
    %s1058 = scalar_lea.sflag [#allocation4], 1
    %1059 = vsyncpa %s1058, 1

</llo_original>
